<compile_context>
chip_gen: v5e
topology: v5e:2x2
jax: 0.10.0
libtpu: 0.0.40
codegen_flags: <defaults>
</compile_context>

<pallas_src>
import jax
import jax.numpy as jnp
from jax.experimental import pallas as pl
from jax.experimental.pallas import tpu as pltpu

EPS = 1e-5  # nn.InstanceNorm3d default eps


def _round_up(x, m):
    return ((x + m - 1) // m) * m


# ---------------------------------------------------------------------------
# Pallas kernels
# ---------------------------------------------------------------------------
def _conv_in_prelu_kernel(p_ref, w_ref, a_ref, o_ref):
    """Fused conv-as-matmul + InstanceNorm + PReLU, lane-dense (Cout, P) layout.

    p_ref: (1, K, P)   bf16 im2col patches (K = 27*Cin padded to x8, P on lanes)
    w_ref: (Cout, K)   bf16 conv weight as a matmul matrix
    a_ref: (1, 1)      f32 shared PReLU slope
    o_ref: (1, Cout, P) bf16
    """
    p = p_ref[0]                                                       # (K, P)
    # bf16 x bf16 -> f32 accumulation on the MXU; P feeds the wide MXU dim.
    y = jnp.dot(w_ref[...], p, preferred_element_type=jnp.float32)    # (Cout, P)
    # NOTE: conv bias is intentionally not added — InstanceNorm (affine=False)
    # subtracts the per-channel mean right after, so it cancels exactly.
    mean = jnp.mean(y, axis=-1, keepdims=True)                         # (Cout, 1)
    yc = y - mean
    var = jnp.mean(yc * yc, axis=-1, keepdims=True)                    # (Cout, 1)
    y = yc * jax.lax.rsqrt(var + EPS)          # per-channel scale, then broadcast
    # TODO(synk): dropout (p=0.1) between norm and act omitted (eval semantics).
    y = jnp.where(y > 0, y, a_ref[...] * y)                            # PReLU
    o_ref[0] = y.astype(o_ref.dtype)


def _mlp_kernel(x_ref, w1, b1, w2, b2, w3, b3, w4, b4, o_ref):
    """Fused classifier: Linear->ReLU x3 -> Linear (bf16 matmuls, f32 accum)."""
    h = jnp.dot(x_ref[...], w1[...], preferred_element_type=jnp.float32) + b1[...]
    h = jnp.maximum(h, 0.0).astype(jnp.bfloat16)
    h = jnp.dot(h, w2[...], preferred_element_type=jnp.float32) + b2[...]
    h = jnp.maximum(h, 0.0).astype(jnp.bfloat16)
    h = jnp.dot(h, w3[...], preferred_element_type=jnp.float32) + b3[...]
    h = jnp.maximum(h, 0.0).astype(jnp.bfloat16)
    # TODO(synk): classifier dropouts (p=0.3) omitted (eval semantics).
    o_ref[...] = (jnp.dot(h, w4[...], preferred_element_type=jnp.float32)
                  + b4[...]).astype(o_ref.dtype)


# ---------------------------------------------------------------------------
# Wrappers
# ---------------------------------------------------------------------------
def conv_block(patches, w_mat, alpha):
    """patches: (N, K, P) bf16; w_mat: (Cout, K) bf16; alpha: (1, 1) f32."""
    N, K, P = patches.shape
    Cout = w_mat.shape[0]
    # TODO(synk): at the module's real 240x240x155 input, tile P with a grid
    # axis + one-pass sum/sumsq scratch accumulators (VMEM limits, esp. v7x).
    return pl.pallas_call(
        _conv_in_prelu_kernel,
        out_shape=jax.ShapeDtypeStruct((N, Cout, P), jnp.bfloat16),
        grid=(N,),
        in_specs=[
            pl.BlockSpec((1, K, P), lambda n: (n, 0, 0)),
            pl.BlockSpec((Cout, K), lambda n: (0, 0)),
            pl.BlockSpec((1, 1), lambda n: (0, 0)),
        ],
        out_specs=pl.BlockSpec((1, Cout, P), lambda n: (n, 0, 0)),
        compiler_params=pltpu.CompilerParams(
            dimension_semantics=("parallel",)),   # batch is independent -> 2 TCs on v7x
    )(patches, w_mat, alpha)


def classifier(x, mlp_params):
    """x: (N, F) bf16; mlp_params: list of (W: (in, out) bf16, b: (1, out) f32)."""
    N, _ = x.shape
    (w1, b1), (w2, b2), (w3, b3), (w4, b4) = mlp_params
    num_classes = w4.shape[1]

    def full(shape):
        return pl.BlockSpec(shape, lambda i, _s=shape: (0,) * len(_s))

    # TODO(synk): at the module's hardcoded flat_size=144000, w1 must be tiled
    # over the contraction dim (grid + f32 VMEM accumulator); fine at 512 here.
    return pl.pallas_call(
        _mlp_kernel,
        out_shape=jax.ShapeDtypeStruct((N, num_classes), jnp.float32),
        grid=(1,),
        in_specs=[full(x.shape),
                  full(w1.shape), full(b1.shape),
                  full(w2.shape), full(b2.shape),
                  full(w3.shape), full(b3.shape),
                  full(w4.shape), full(b4.shape)],
        out_specs=full((N, num_classes)),
    )(x, w1, b1, w2, b2, w3, b3, w4, b4)


def im2col_3d(x, stride):
    """x: (N, C, D, H, W) NCDHW; conv kernel=3, pad=1, given stride.

    Returns transposed patches (N, K, P) with K = 27*C ordered (kd, kh, kw)
    outer / channel inner, and P = Do*Ho*Wo on the lane axis.
    """
    N, C, D, H, W = x.shape
    xp = jnp.pad(x, ((0, 0), (0, 0), (1, 1), (1, 1), (1, 1)))
    Do = (D - 1) // stride + 1
    Ho = (H - 1) // stride + 1
    Wo = (W - 1) // stride + 1
    cols = []
    for kd in range(3):
        for kh in range(3):
            for kw in range(3):
                cols.append(
                    xp[:, :,
                       kd:kd + stride * (Do - 1) + 1:stride,
                       kh:kh + stride * (Ho - 1) + 1:stride,
                       kw:kw + stride * (Wo - 1) + 1:stride]
                    .reshape(N, C, Do * Ho * Wo))
    patches = jnp.concatenate(cols, axis=1)        # (N, 27*C, P)
    return patches, (Do, Ho, Wo)


# ---------------------------------------------------------------------------
# Parameters (deterministic, synthetic)
# ---------------------------------------------------------------------------
def init_params(key, in_channels=4, depth=5, num_classes=10, flat_size=512):
    params = {"conv": [], "mlp": []}
    in_c, out_c = in_channels, in_channels
    for i in range(depth):
        key, k1, k2 = jax.random.split(key, 3)
        w = jax.random.normal(k1, (out_c, in_c, 3, 3, 3), jnp.float32) * 0.05
        # Conv bias exists in the module but is normalized away by InstanceNorm
        # (affine=False); kept here for parameter fidelity, unused in forward.
        b = jax.random.normal(k2, (out_c,), jnp.float32) * 0.01
        alpha = jnp.asarray(0.2, jnp.float32)          # PReLU init=0.2 (shared)
        stride = 2 if i < depth - 1 else 1
        params["conv"].append((w, b, alpha, stride))
        in_c = out_c
        out_c *= 2
    dims = [flat_size, 1024, 256, 64, num_classes]
    for i in range(4):
        key, k1, k2 = jax.random.split(key, 3)
        w = jax.random.normal(k1, (dims[i], dims[i + 1]), jnp.float32) \
            * (1.0 / jnp.sqrt(jnp.float32(dims[i])))
        b = jax.random.normal(k2, (dims[i + 1],), jnp.float32) * 0.01
        params["mlp"].append((w, b.reshape(1, -1)))
    return params


# ---------------------------------------------------------------------------
# Forward pass (mirrors EncoderClassifier.forward, skips are discarded)
# ---------------------------------------------------------------------------
def encoder_classifier_forward(x_ncdhw, params):
    N = x_ncdhw.shape[0]
    x = x_ncdhw.astype(jnp.bfloat16)          # bf16 activations, f32 accumulation
    for (w, _b_unused, alpha, stride) in params["conv"]:
        cout, cin = w.shape[0], w.shape[1]
        # TODO(synk): im2col still materializes the 27x patch tensor in HBM; at
        # the real input size this should become an in-kernel direct conv
        # (27 accumulating matmuls over shifted slices) with P tiling.
        patches, (Do, Ho, Wo) = im2col_3d(x, stride)
        K = 27 * cin
        Kp = _round_up(K, 8)                  # sublane-align the contraction dim
        if Kp != K:
            patches = jnp.pad(patches, ((0, 0), (0, Kp - K), (0, 0)))
        # weight (Cout, Cin, kd, kh, kw) -> (Cout, 27*Cin), matching the patch
        # ordering [kd, kh, kw] outer / channel inner.
        w_mat = jnp.transpose(w, (0, 2, 3, 4, 1)).reshape(cout, K)
        if Kp != K:
            w_mat = jnp.pad(w_mat, ((0, 0), (0, Kp - K)))
        y = conv_block(patches, w_mat.astype(jnp.bfloat16), alpha.reshape(1, 1))
        x = y.reshape(N, cout, Do, Ho, Wo)    # stays NCDHW for next block
    # (N, Cout, D, H, W) row-major reshape == PyTorch flatten(1) on NCDHW.
    flat = x.reshape(N, -1)
    mlp = [(wm.astype(jnp.bfloat16), bm) for (wm, bm) in params["mlp"]]
    return classifier(flat, mlp)


if __name__ == "__main__":
    key = jax.random.PRNGKey(0)
    kx, kp = jax.random.split(key)

    N, C, D, H, W = 2, 4, 32, 32, 32
    x = jax.random.normal(kx, (N, C, D, H, W), jnp.float32)

    # After 4 stride-2 convs: 32 -> 16 -> 8 -> 4 -> 2 (last block stride 1),
    # final channels = 64, so flattened size = 64 * 2*2*2 = 512.
    flat_size = 64 * 2 * 2 * 2
    params = init_params(kp, in_channels=C, depth=5, num_classes=10,
                         flat_size=flat_size)

    out = encoder_classifier_forward(x, params)
    out = jax.block_until_ready(out)
    assert out.shape == (N, 10), out.shape
    assert bool(jnp.all(jnp.isfinite(out)))
    print("KERNEL_OK")
</pallas_src>

<mosaic_0001>
module attributes {stable_mosaic.version = 11 : i64} {
  func.func @_conv_in_prelu_kernel(%arg0: i32, %arg1: memref<1x112x4096xbf16, #tpu.memory_space<vmem>>, %arg2: memref<4x112xbf16, #tpu.memory_space<vmem>>, %arg3: memref<1x1xf32, #tpu.memory_space<vmem>>, %arg4: memref<1x4x4096xbf16, #tpu.memory_space<vmem>>) attributes {dimension_semantics = [#tpu.dimension_semantics<parallel>], iteration_bounds = array<i64: 2>, scalar_prefetch = 0 : i64, scratch_operands = 0 : i64, tpu.core_type = #tpu.core_type<tc>, window_params = [{transform_indices = @transform_0, window_bounds = array<i64: 1, 112, 4096>}, {pipeline_mode = #tpu.pipeline_mode<synchronous>, transform_indices = @transform_1, window_bounds = array<i64: 4, 112>}, {pipeline_mode = #tpu.pipeline_mode<synchronous>, transform_indices = @transform_2, window_bounds = array<i64: 1, 1>}, {transform_indices = @transform_3, window_bounds = array<i64: 1, 4, 4096>}]} {
    %c0 = arith.constant 0 : index
    %c0_0 = arith.constant 0 : index
    %c0_1 = arith.constant 0 : index
    %0 = vector.load %arg1[%c0, %c0_0, %c0_1] : memref<1x112x4096xbf16, #tpu.memory_space<vmem>>, vector<1x112x4096xbf16>
    %1 = vector.shape_cast %0 : vector<1x112x4096xbf16> to vector<112x4096xbf16>
    %c0_2 = arith.constant 0 : index
    %c0_3 = arith.constant 0 : index
    %2 = vector.load %arg2[%c0_2, %c0_3] : memref<4x112xbf16, #tpu.memory_space<vmem>>, vector<4x112xbf16>
    %cst = arith.constant dense<0.000000e+00> : vector<4x4096xf32>
    %3 = tpu.matmul %2, %1, %cst {dimension_numbers = #tpu.dot_dimension_numbers<[1], [0], [0], [1], [0, 0, 1, 1], [], []>} : vector<4x112xbf16>, vector<112x4096xbf16>, vector<4x4096xf32> -> vector<4x4096xf32>
    %cst_4 = arith.constant dense<0.000000e+00> : vector<4xf32>
    %4 = vector.multi_reduction <add>, %3, %cst_4 [1] : vector<4x4096xf32> to vector<4xf32>
    %5 = vector.shape_cast %4 : vector<4xf32> to vector<4x1xf32>
    %cst_5 = arith.constant 4.096000e+03 : f32
    %6 = vector.broadcast %cst_5 : f32 to vector<4x1xf32>
    %7 = arith.divf %5, %6 : vector<4x1xf32>
    %8 = vector.broadcast %7 : vector<4x1xf32> to vector<4x4096xf32>
    %9 = arith.subf %3, %8 : vector<4x4096xf32>
    %10 = arith.mulf %9, %9 : vector<4x4096xf32>
    %cst_6 = arith.constant dense<0.000000e+00> : vector<4xf32>
    %11 = vector.multi_reduction <add>, %10, %cst_6 [1] : vector<4x4096xf32> to vector<4xf32>
    %12 = vector.shape_cast %11 : vector<4xf32> to vector<4x1xf32>
    %cst_7 = arith.constant 4.096000e+03 : f32
    %13 = vector.broadcast %cst_7 : f32 to vector<4x1xf32>
    %14 = arith.divf %12, %13 : vector<4x1xf32>
    %cst_8 = arith.constant 9.99999974E-6 : f32
    %15 = vector.broadcast %cst_8 : f32 to vector<4x1xf32>
    %16 = arith.addf %14, %15 : vector<4x1xf32>
    %17 = math.rsqrt %16 : vector<4x1xf32>
    %18 = vector.broadcast %17 : vector<4x1xf32> to vector<4x4096xf32>
    %19 = arith.mulf %9, %18 : vector<4x4096xf32>
    %cst_9 = arith.constant 0.000000e+00 : f32
    %20 = vector.broadcast %cst_9 : f32 to vector<4x4096xf32>
    %21 = arith.cmpf ogt, %19, %20 : vector<4x4096xf32>
    %c0_10 = arith.constant 0 : index
    %c0_11 = arith.constant 0 : index
    %22 = vector.load %arg3[%c0_10, %c0_11] : memref<1x1xf32, #tpu.memory_space<vmem>>, vector<1x1xf32>
    %23 = vector.broadcast %22 : vector<1x1xf32> to vector<4x4096xf32>
    %24 = arith.mulf %23, %19 : vector<4x4096xf32>
    %25 = arith.select %21, %19, %24 : vector<4x4096xi1>, vector<4x4096xf32>
    %26 = arith.truncf %25 : vector<4x4096xf32> to vector<4x4096xbf16>
    %c0_12 = arith.constant 0 : index
    %c0_13 = arith.constant 0 : index
    %c0_14 = arith.constant 0 : index
    %27 = vector.load %arg4[%c0_12, %c0_13, %c0_14] : memref<1x4x4096xbf16, #tpu.memory_space<vmem>>, vector<1x4x4096xbf16>
    %28 = vector.shape_cast %27 : vector<1x4x4096xbf16> to vector<4x4096xbf16>
    %29 = vector.shape_cast %26 : vector<4x4096xbf16> to vector<1x4x4096xbf16>
    tpu.vector_store %arg4[%c0_12, %c0_13, %c0_14], %29 {strides = array<i32>} : memref<1x4x4096xbf16, #tpu.memory_space<vmem>>, vector<1x4x4096xbf16>,
    return
  }
  func.func @transform_0(%arg0: i32) -> (i32, i32, i32) {
    %c0_i32 = arith.constant 0 : i32
    %c0_i32_0 = arith.constant 0 : i32
    %c0_i32_1 = arith.constant 0 : i32
    return %arg0, %c0_i32, %c0_i32_0 : i32, i32, i32
  }
  func.func @transform_1(%arg0: i32) -> (i32, i32) {
    %c0_i32 = arith.constant 0 : i32
    %c0_i32_0 = arith.constant 0 : i32
    %c0_i32_1 = arith.constant 0 : i32
    return %c0_i32, %c0_i32_0 : i32, i32
  }
  func.func @transform_2(%arg0: i32) -> (i32, i32) {
    %c0_i32 = arith.constant 0 : i32
    %c0_i32_0 = arith.constant 0 : i32
    %c0_i32_1 = arith.constant 0 : i32
    return %c0_i32, %c0_i32_0 : i32, i32
  }
  func.func @transform_3(%arg0: i32) -> (i32, i32, i32) {
    %c0_i32 = arith.constant 0 : i32
    %c0_i32_0 = arith.constant 0 : i32
    %c0_i32_1 = arith.constant 0 : i32
    return %arg0, %c0_i32, %c0_i32_0 : i32, i32, i32
  }
}

</mosaic_0001>

<llo_original>
// kernel: tpu_custom_call.1
$region0: #{tpu_custom_call.1}
  #allocation0 [shape = 'u32[]', space=smem, size = 0x4, offset = 0x4, fixed_abs, tag = 'smem constant byte address 0x4 - core index']
  #allocation1 [shape = 'u32[72,128]{1,0:T(1,128)}', space=vmem, size = 0x9000, scoped, tag = 'internal scratch']
  #allocation2 [shape = 'f32[1,1]{1,0:T(1,128)S(1)}', space=vmem, size = 0x200, scoped, tag = 'scoped memory for tpu_custom_call.1']
  %s0 = inlined_call_operand.hbm [shape: bf16[2,112,4096], index: 0, kind: input, shape index: {}]
  %s1 = inlined_call_operand.hbm [shape: bf16[4,112], index: 1, kind: input, shape index: {}]
  %s2 = inlined_call_operand.<no memory space> [shape: f32[1,1], index: 2, kind: input, shape index: {}]
  %s3 = inlined_call_operand.hbm [shape: bf16[2,4,4096], index: 3, kind: output, shape index: {}]
  %s4 = sld [smem:[#allocation0]]
  $region53: #{tpu_custom_call.1} parent=0
    _
  %s6 = ssub.s32 1, %s4
  %s7 = scalar_select 0, %s6, %s4
  %v8 = vstv %s2
  %9 = vst [vmem:[#allocation2] sm:$0x1] %v8
  $region1: #{tpu_custom_call.1} parent=0
    #allocation3 [shape = 'u8[1835008]{0}', space=vmem, size = 0x1c0000, scoped, tag = 'input window, operand 0']
    #allocation4 [shape = 's32[2]{0}', space=sflag, size = 0x8, scoped, tag = 'scoped memory for tpu_custom_call.1']
    #allocation5 [shape = 's32[2]{0}', space=sflag, size = 0x8, scoped, tag = 'scoped memory for tpu_custom_call.1']
    #allocation6 [shape = 'u8[1024]{0}', space=vmem, size = 0x400, scoped, tag = 'input window, operand 1, single buffered']
    #allocation7 [shape = 's32[1]{0}', space=sflag, size = 0x4, scoped, tag = 'scoped memory for tpu_custom_call.1']
    #allocation8 [shape = 'u8[65536]{0}', space=vmem, size = 0x10000, scoped, tag = 'output window, operand 0']
    %10 = vsyncpa [#allocation4], 0
    %s11 = scalar_lea.sflag [#allocation4], 1
    %12 = vsyncpa %s11, 0
    %13 = vsyncpa [#allocation7], 0
    %14 = vsyncpa [#allocation5], 0
    %s15 = scalar_lea.sflag [#allocation5], 1
    %16 = vsyncpa %s15, 0
    loop: start=0, step=1, limit=4
    $region2: #{tpu_custom_call.1} parent=1 // loop_pre_header
      _
    $region3: #{tpu_custom_call.1} parent=1 // loop_header
      %s18 = sphi 0, %s22
      %p19 = scmp.ge.s32.totalorder %s18, 4
      %s28 = sphi 0, %s30
      %s31 = sphi 0, %s28
      %s32 = sphi 0, %s31
      %s48 = sphi 0, %s32
      %s52 = sphi 0, %s52
      %s54 = sphi 0, %s52
      %s55 = sphi 0, %s54
      %s69 = sphi 0, %s55
      %s73 = sphi 0, %s73
      %s75 = sphi 0, %s73
      %s76 = sphi 0, %s75
      %s90 = sphi 0, %s76
      %s96 = sphi 0, %s98
      %s99 = sphi 0, %s96
      %s100 = sphi 0, %s99
      %s116 = sphi 0, %s100
    $region4: #{tpu_custom_call.1} parent=1 // loop_header_branch
      %21 = sbr.rel (%p19) target = $region8
    $region5: #{tpu_custom_call.1} parent=1 // loop_body
      %s23 = ssub.s32 %s18, 1
      %s24 = ssub.s32 %s18, 2
      %s25 = sadd.s32 %s18, 1
      %s26 = ssub.s32 %s18, %s25
      %p27 = scmp.eq.s32.totalorder %s26, 0
      %s29 = sadd.s32 %s28, 1
      %s30 = scalar_select %p27, %s28, %s29
      %p33 = pneg %p27
      %p34 = scmp.eq.s32.totalorder %s18, 1
      %p35 = por %p33, %p34
      %p36 = scmp.ne.s32.totalorder %s28, %s31
      %p37 = scmp.eq.s32.totalorder %s18, 0
      %p38 = por %p36, %p37
      %p39 = scmp.ne.s32.totalorder %s28, %s31
      %p40 = scmp.eq.s32.totalorder %s23, 1
      %p41 = por %p39, %p40
      %p42 = scmp.ne.s32.totalorder %s31, %s32
      %p43 = scmp.eq.s32.totalorder %s23, 0
      %p44 = por %p42, %p43
      %p45 = scmp.ne.s32.totalorder %s31, %s32
      %p46 = scmp.eq.s32.totalorder %s24, 1
      %p47 = por %p45, %p46
      %p49 = scmp.ne.s32.totalorder %s32, %s48
      %p50 = scmp.eq.s32.totalorder %s24, 0
      %p51 = por %p49, %p50
      %s53 = sadd.s32 %s52, 1
      %p56 = scmp.eq.s32.totalorder %s18, 1
      %p57 = scmp.ne.s32.totalorder %s52, %s54
      %p58 = scmp.eq.s32.totalorder %s18, 0
      %p59 = por %p57, %p58
      %p60 = scmp.ne.s32.totalorder %s52, %s54
      %p61 = scmp.eq.s32.totalorder %s23, 1
      %p62 = por %p60, %p61
      %p63 = scmp.ne.s32.totalorder %s54, %s55
      %p64 = scmp.eq.s32.totalorder %s23, 0
      %p65 = por %p63, %p64
      %p66 = scmp.ne.s32.totalorder %s54, %s55
      %p67 = scmp.eq.s32.totalorder %s24, 1
      %p68 = por %p66, %p67
      %p70 = scmp.ne.s32.totalorder %s55, %s69
      %p71 = scmp.eq.s32.totalorder %s24, 0
      %p72 = por %p70, %p71
      %s74 = sadd.s32 %s73, 1
      %p77 = scmp.eq.s32.totalorder %s18, 1
      %p78 = scmp.ne.s32.totalorder %s73, %s75
      %p79 = scmp.eq.s32.totalorder %s18, 0
      %p80 = por %p78, %p79
      %p81 = scmp.ne.s32.totalorder %s73, %s75
      %p82 = scmp.eq.s32.totalorder %s23, 1
      %p83 = por %p81, %p82
      %p84 = scmp.ne.s32.totalorder %s75, %s76
      %p85 = scmp.eq.s32.totalorder %s23, 0
      %p86 = por %p84, %p85
      %p87 = scmp.ne.s32.totalorder %s75, %s76
      %p88 = scmp.eq.s32.totalorder %s24, 1
      %p89 = por %p87, %p88
      %p91 = scmp.ne.s32.totalorder %s76, %s90
      %p92 = scmp.eq.s32.totalorder %s24, 0
      %p93 = por %p91, %p92
      %s94 = ssub.s32 %s18, %s25
      %p95 = scmp.eq.s32.totalorder %s94, 0
      %s97 = sadd.s32 %s96, 1
      %s98 = scalar_select %p95, %s96, %s97
      %p101 = pneg %p95
      %p102 = scmp.eq.s32.totalorder %s18, 1
      %p103 = por %p101, %p102
      %p104 = scmp.ne.s32.totalorder %s96, %s99
      %p105 = scmp.eq.s32.totalorder %s18, 0
      %p106 = por %p104, %p105
      %p107 = scmp.ne.s32.totalorder %s96, %s99
      %p108 = scmp.eq.s32.totalorder %s23, 1
      %p109 = por %p107, %p108
      %p110 = scmp.ne.s32.totalorder %s99, %s100
      %p111 = scmp.eq.s32.totalorder %s23, 0
      %p112 = por %p110, %p111
      %p113 = scmp.ne.s32.totalorder %s99, %s100
      %p114 = scmp.eq.s32.totalorder %s24, 1
      %p115 = por %p113, %p114
      %p117 = scmp.ne.s32.totalorder %s100, %s116
      %p118 = scmp.eq.s32.totalorder %s24, 0
      %p119 = por %p117, %p118
      %p120 = scmp.le.s32.totalorder 1, %s18
      %p121 = scmp.lt.s32.totalorder %s18, 3
      %p122 = pnand %p120, %p121
      %p123 = pneg %p122
      // Predicated region
      $region9: #{tpu_custom_call.1} parent=5 // pred_check
        _
      $region10: #{tpu_custom_call.1} parent=5 // pred_check_branch
        %125 = sbr.rel (%p122) target = $region12
      $region11: #{tpu_custom_call.1} parent=5 // pred_region
        %s126 = ssub.s32 %s18, 1
        // Predicated region
        $region13: #{tpu_custom_call.1} parent=11 // pred_check
          %p127 = pneg %p65
        $region14: #{tpu_custom_call.1} parent=11 // pred_check_branch
          %129 = sbr.rel (%p127) target = $region16
        $region15: #{tpu_custom_call.1} parent=11 // pred_region
          %131 = vsyncadd [#allocation7], 0
          %s133 = sshll.u32 %s1, 4
          %s134 = int_to_ptr.hbm [resolvable:$true] %s133
          %s135 = sshll.u32 [#allocation6], 4
          %s136 = int_to_ptr.vmem [resolvable:$true] %s135
          %138 = dma.hbm_to_vmem [thread:$0]  %s134, 32, %s136, [#allocation7]
        $region16: #{tpu_custom_call.1} parent=11 // pred_fallthru
          _
        // Predicated region
        $region17: #{tpu_custom_call.1} parent=11 // pred_check
          %p139 = pneg %p86
        $region18: #{tpu_custom_call.1} parent=11 // pred_check_branch
          %141 = sbr.rel (%p139) target = $region20
        $region19: #{tpu_custom_call.1} parent=11 // pred_region
          _
        $region20: #{tpu_custom_call.1} parent=11 // pred_fallthru
          _
      $region12: #{tpu_custom_call.1} parent=5 // pred_fallthru
        _
      %p142 = scmp.lt.s32.totalorder %s18, 2
      // Predicated region
      $region21: #{tpu_custom_call.1} parent=5 // pred_check
        %p143 = pneg %p142
      $region22: #{tpu_custom_call.1} parent=5 // pred_check_branch
        %145 = sbr.rel (%p143) target = $region24
      $region23: #{tpu_custom_call.1} parent=5 // pred_region
        // Predicated region
        $region25: #{tpu_custom_call.1} parent=23 // pred_check
          %p146 = pneg %p38
        $region26: #{tpu_custom_call.1} parent=23 // pred_check_branch
          %148 = sbr.rel (%p146) target = $region28
        $region27: #{tpu_custom_call.1} parent=23 // pred_region
          %s149 = sand.u32 %s28, 1
          %s150 = scalar_lea.sflag [#allocation4], %s149
          %s151 = sand.u32 %s28, 1
          %s152 = smul.addr %s151, 1792
          %s153 = scalar_lea.vmem [#allocation3], %s152
          %155 = vsyncadd %s150, 0
          %s156 = smul.addr %s18, 448
          %s157 = smul.addr %s156, 4
          %s158 = scalar_lea.hbm %s0, %s157
          %s159 = sshll.u32 %s158, 4
          %s160 = int_to_ptr.hbm [resolvable:$true] %s159
          %s161 = sshll.u32 %s153, 4
          %s162 = int_to_ptr.vmem [resolvable:$true] %s161
          %167 = dma.hbm_to_vmem [thread:$0]  %s160, 28672, %s162, %s150, 2048, 2048, 128
        $region28: #{tpu_custom_call.1} parent=23 // pred_fallthru
          _
      $region24: #{tpu_custom_call.1} parent=5 // pred_fallthru
        _
      %p168 = scmp.le.s32.totalorder 1, %s18
      %p169 = scmp.lt.s32.totalorder %s18, 3
      %p170 = pnand %p168, %p169
      %p171 = pneg %p170
      // Predicated region
      $region29: #{tpu_custom_call.1} parent=5 // pred_check
        _
      $region30: #{tpu_custom_call.1} parent=5 // pred_check_branch
        %173 = sbr.rel (%p170) target = $region32
      $region31: #{tpu_custom_call.1} parent=5 // pred_region
        %s174 = ssub.s32 %s18, 1
        %s175 = sand.u32 %s31, 1
        %s176 = scalar_lea.sflag [#allocation4], %s175
        %s177 = sand.u32 %s31, 1
        %s178 = smul.addr %s177, 1792
        %s179 = scalar_lea.vmem [#allocation3], %s178
        // Predicated region
        $region33: #{tpu_custom_call.1} parent=31 // pred_check
          %p180 = pneg %p44
        $region34: #{tpu_custom_call.1} parent=31 // pred_check_branch
          %182 = sbr.rel (%p180) target = $region36
        $region35: #{tpu_custom_call.1} parent=31 // pred_region
          %184 = dma.done %s176, 28672
        $region36: #{tpu_custom_call.1} parent=31 // pred_fallthru
          _
        // Predicated region
        $region37: #{tpu_custom_call.1} parent=31 // pred_check
          %p185 = pneg %p65
        $region38: #{tpu_custom_call.1} parent=31 // pred_check_branch
          %187 = sbr.rel (%p185) target = $region40
        $region39: #{tpu_custom_call.1} parent=31 // pred_region
          %189 = dma.done [#allocation7], 32
        $region40: #{tpu_custom_call.1} parent=31 // pred_fallthru
          _
        %s190 = sand.u32 %s31, 1
        %s191 = scalar_lea.sflag [#allocation4], %s190
        %s192 = sand.u32 %s31, 1
        %s193 = smul.addr %s192, 1792
        %s194 = scalar_lea.vmem [#allocation3], %s193
        %p195 = pneg %p44
        %p196 = pneg %p41
        %p197 = pneg %p65
        %p198 = pneg %p62
        %p199 = pneg %p86
        %p200 = pneg %p83
        %p201 = pneg %p112
        %p202 = pneg %p109
        %s203 = sand.u32 %s99, 1
        %s204 = scalar_lea.sflag [#allocation5], %s203
        %s205 = sand.u32 %s99, 1
        %s206 = smul.addr %s205, 64
        %s207 = scalar_lea.vmem [#allocation8], %s206
        %v209 = vld [vmem:[%s179] sm:$0xff]
        %v210 = vld [vmem:[%s179 + $0x8] sm:$0xff]
        %v211 = vld [vmem:[%s179 + $0x10] sm:$0xff]
        %v212 = vld [vmem:[%s179 + $0x18] sm:$0xff]
        %v213 = vld [vmem:[%s179 + $0x20] sm:$0xff]
        %v214 = vld [vmem:[%s179 + $0x28] sm:$0xff]
        %v215 = vld [vmem:[%s179 + $0x30] sm:$0xff]
        %v216 = vld [vmem:[%s179 + $0x38] sm:$0xff]
        %v217 = vld [vmem:[%s179 + $0x40] sm:$0xff]
        %v218 = vld [vmem:[%s179 + $0x48] sm:$0xff]
        %v219 = vld [vmem:[%s179 + $0x50] sm:$0xff]
        %v220 = vld [vmem:[%s179 + $0x58] sm:$0xff]
        %v221 = vld [vmem:[%s179 + $0x60] sm:$0xff]
        %v222 = vld [vmem:[%s179 + $0x68] sm:$0xff]
        %v223 = vld [vmem:[%s179 + $0x70] sm:$0xff]
        %v224 = vld [vmem:[%s179 + $0x78] sm:$0xff]
        %v225 = vld [vmem:[%s179 + $0x80] sm:$0xff]
        %v226 = vld [vmem:[%s179 + $0x88] sm:$0xff]
        %v227 = vld [vmem:[%s179 + $0x90] sm:$0xff]
        %v228 = vld [vmem:[%s179 + $0x98] sm:$0xff]
        %v229 = vld [vmem:[%s179 + $0xa0] sm:$0xff]
        %v230 = vld [vmem:[%s179 + $0xa8] sm:$0xff]
        %v231 = vld [vmem:[%s179 + $0xb0] sm:$0xff]
        %v232 = vld [vmem:[%s179 + $0xb8] sm:$0xff]
        %v233 = vld [vmem:[%s179 + $0xc0] sm:$0xff]
        %v234 = vld [vmem:[%s179 + $0xc8] sm:$0xff]
        %v235 = vld [vmem:[%s179 + $0xd0] sm:$0xff]
        %v236 = vld [vmem:[%s179 + $0xd8] sm:$0xff]
        %v237 = vld [vmem:[%s179 + $0xe0] sm:$0xff]
        %v238 = vld [vmem:[%s179 + $0xe8] sm:$0xff]
        %v239 = vld [vmem:[%s179 + $0xf0] sm:$0xff]
        %v240 = vld [vmem:[%s179 + $0xf8] sm:$0xff]
        %v241 = vld [vmem:[%s179 + $0x100] sm:$0xff]
        %v242 = vld [vmem:[%s179 + $0x108] sm:$0xff]
        %v243 = vld [vmem:[%s179 + $0x110] sm:$0xff]
        %v244 = vld [vmem:[%s179 + $0x118] sm:$0xff]
        %v245 = vld [vmem:[%s179 + $0x120] sm:$0xff]
        %v246 = vld [vmem:[%s179 + $0x128] sm:$0xff]
        %v247 = vld [vmem:[%s179 + $0x130] sm:$0xff]
        %v248 = vld [vmem:[%s179 + $0x138] sm:$0xff]
        %v249 = vld [vmem:[%s179 + $0x140] sm:$0xff]
        %v250 = vld [vmem:[%s179 + $0x148] sm:$0xff]
        %v251 = vld [vmem:[%s179 + $0x150] sm:$0xff]
        %v252 = vld [vmem:[%s179 + $0x158] sm:$0xff]
        %v253 = vld [vmem:[%s179 + $0x160] sm:$0xff]
        %v254 = vld [vmem:[%s179 + $0x168] sm:$0xff]
        %v255 = vld [vmem:[%s179 + $0x170] sm:$0xff]
        %v256 = vld [vmem:[%s179 + $0x178] sm:$0xff]
        %v257 = vld [vmem:[%s179 + $0x180] sm:$0xff]
        %v258 = vld [vmem:[%s179 + $0x188] sm:$0xff]
        %v259 = vld [vmem:[%s179 + $0x190] sm:$0xff]
        %v260 = vld [vmem:[%s179 + $0x198] sm:$0xff]
        %v261 = vld [vmem:[%s179 + $0x1a0] sm:$0xff]
        %v262 = vld [vmem:[%s179 + $0x1a8] sm:$0xff]
        %v263 = vld [vmem:[%s179 + $0x1b0] sm:$0xff]
        %v264 = vld [vmem:[%s179 + $0x1b8] sm:$0xff]
        %v265 = vld [vmem:[%s179 + $0x1c0] sm:$0xff]
        %v266 = vld [vmem:[%s179 + $0x1c8] sm:$0xff]
        %v267 = vld [vmem:[%s179 + $0x1d0] sm:$0xff]
        %v268 = vld [vmem:[%s179 + $0x1d8] sm:$0xff]
        %v269 = vld [vmem:[%s179 + $0x1e0] sm:$0xff]
        %v270 = vld [vmem:[%s179 + $0x1e8] sm:$0xff]
        %v271 = vld [vmem:[%s179 + $0x1f0] sm:$0xff]
        %v272 = vld [vmem:[%s179 + $0x1f8] sm:$0xff]
        %v273 = vld [vmem:[%s179 + $0x200] sm:$0xff]
        %v274 = vld [vmem:[%s179 + $0x208] sm:$0xff]
        %v275 = vld [vmem:[%s179 + $0x210] sm:$0xff]
        %v276 = vld [vmem:[%s179 + $0x218] sm:$0xff]
        %v277 = vld [vmem:[%s179 + $0x220] sm:$0xff]
        %v278 = vld [vmem:[%s179 + $0x228] sm:$0xff]
        %v279 = vld [vmem:[%s179 + $0x230] sm:$0xff]
        %v280 = vld [vmem:[%s179 + $0x238] sm:$0xff]
        %v281 = vld [vmem:[%s179 + $0x240] sm:$0xff]
        %v282 = vld [vmem:[%s179 + $0x248] sm:$0xff]
        %v283 = vld [vmem:[%s179 + $0x250] sm:$0xff]
        %v284 = vld [vmem:[%s179 + $0x258] sm:$0xff]
        %v285 = vld [vmem:[%s179 + $0x260] sm:$0xff]
        %v286 = vld [vmem:[%s179 + $0x268] sm:$0xff]
        %v287 = vld [vmem:[%s179 + $0x270] sm:$0xff]
        %v288 = vld [vmem:[%s179 + $0x278] sm:$0xff]
        %v289 = vld [vmem:[%s179 + $0x280] sm:$0xff]
        %v290 = vld [vmem:[%s179 + $0x288] sm:$0xff]
        %v291 = vld [vmem:[%s179 + $0x290] sm:$0xff]
        %v292 = vld [vmem:[%s179 + $0x298] sm:$0xff]
        %v293 = vld [vmem:[%s179 + $0x2a0] sm:$0xff]
        %v294 = vld [vmem:[%s179 + $0x2a8] sm:$0xff]
        %v295 = vld [vmem:[%s179 + $0x2b0] sm:$0xff]
        %v296 = vld [vmem:[%s179 + $0x2b8] sm:$0xff]
        %v297 = vld [vmem:[%s179 + $0x2c0] sm:$0xff]
        %v298 = vld [vmem:[%s179 + $0x2c8] sm:$0xff]
        %v299 = vld [vmem:[%s179 + $0x2d0] sm:$0xff]
        %v300 = vld [vmem:[%s179 + $0x2d8] sm:$0xff]
        %v301 = vld [vmem:[%s179 + $0x2e0] sm:$0xff]
        %v302 = vld [vmem:[%s179 + $0x2e8] sm:$0xff]
        %v303 = vld [vmem:[%s179 + $0x2f0] sm:$0xff]
        %v304 = vld [vmem:[%s179 + $0x2f8] sm:$0xff]
        %v305 = vld [vmem:[%s179 + $0x300] sm:$0xff]
        %v306 = vld [vmem:[%s179 + $0x308] sm:$0xff]
        %v307 = vld [vmem:[%s179 + $0x310] sm:$0xff]
        %v308 = vld [vmem:[%s179 + $0x318] sm:$0xff]
        %v309 = vld [vmem:[%s179 + $0x320] sm:$0xff]
        %v310 = vld [vmem:[%s179 + $0x328] sm:$0xff]
        %v311 = vld [vmem:[%s179 + $0x330] sm:$0xff]
        %v312 = vld [vmem:[%s179 + $0x338] sm:$0xff]
        %v313 = vld [vmem:[%s179 + $0x340] sm:$0xff]
        %v314 = vld [vmem:[%s179 + $0x348] sm:$0xff]
        %v315 = vld [vmem:[%s179 + $0x350] sm:$0xff]
        %v316 = vld [vmem:[%s179 + $0x358] sm:$0xff]
        %v317 = vld [vmem:[%s179 + $0x360] sm:$0xff]
        %v318 = vld [vmem:[%s179 + $0x368] sm:$0xff]
        %v319 = vld [vmem:[%s179 + $0x370] sm:$0xff]
        %v320 = vld [vmem:[%s179 + $0x378] sm:$0xff]
        %v321 = vld [vmem:[%s179 + $0x380] sm:$0xff]
        %v322 = vld [vmem:[%s179 + $0x388] sm:$0xff]
        %v323 = vld [vmem:[%s179 + $0x390] sm:$0xff]
        %v324 = vld [vmem:[%s179 + $0x398] sm:$0xff]
        %v325 = vld [vmem:[%s179 + $0x3a0] sm:$0xff]
        %v326 = vld [vmem:[%s179 + $0x3a8] sm:$0xff]
        %v327 = vld [vmem:[%s179 + $0x3b0] sm:$0xff]
        %v328 = vld [vmem:[%s179 + $0x3b8] sm:$0xff]
        %v329 = vld [vmem:[%s179 + $0x3c0] sm:$0xff]
        %v330 = vld [vmem:[%s179 + $0x3c8] sm:$0xff]
        %v331 = vld [vmem:[%s179 + $0x3d0] sm:$0xff]
        %v332 = vld [vmem:[%s179 + $0x3d8] sm:$0xff]
        %v333 = vld [vmem:[%s179 + $0x3e0] sm:$0xff]
        %v334 = vld [vmem:[%s179 + $0x3e8] sm:$0xff]
        %v335 = vld [vmem:[%s179 + $0x3f0] sm:$0xff]
        %v336 = vld [vmem:[%s179 + $0x3f8] sm:$0xff]
        %v337 = vld [vmem:[%s179 + $0x400] sm:$0xff]
        %v338 = vld [vmem:[%s179 + $0x408] sm:$0xff]
        %v339 = vld [vmem:[%s179 + $0x410] sm:$0xff]
        %v340 = vld [vmem:[%s179 + $0x418] sm:$0xff]
        %v341 = vld [vmem:[%s179 + $0x420] sm:$0xff]
        %v342 = vld [vmem:[%s179 + $0x428] sm:$0xff]
        %v343 = vld [vmem:[%s179 + $0x430] sm:$0xff]
        %v344 = vld [vmem:[%s179 + $0x438] sm:$0xff]
        %v345 = vld [vmem:[%s179 + $0x440] sm:$0xff]
        %v346 = vld [vmem:[%s179 + $0x448] sm:$0xff]
        %v347 = vld [vmem:[%s179 + $0x450] sm:$0xff]
        %v348 = vld [vmem:[%s179 + $0x458] sm:$0xff]
        %v349 = vld [vmem:[%s179 + $0x460] sm:$0xff]
        %v350 = vld [vmem:[%s179 + $0x468] sm:$0xff]
        %v351 = vld [vmem:[%s179 + $0x470] sm:$0xff]
        %v352 = vld [vmem:[%s179 + $0x478] sm:$0xff]
        %v353 = vld [vmem:[%s179 + $0x480] sm:$0xff]
        %v354 = vld [vmem:[%s179 + $0x488] sm:$0xff]
        %v355 = vld [vmem:[%s179 + $0x490] sm:$0xff]
        %v356 = vld [vmem:[%s179 + $0x498] sm:$0xff]
        %v357 = vld [vmem:[%s179 + $0x4a0] sm:$0xff]
        %v358 = vld [vmem:[%s179 + $0x4a8] sm:$0xff]
        %v359 = vld [vmem:[%s179 + $0x4b0] sm:$0xff]
        %v360 = vld [vmem:[%s179 + $0x4b8] sm:$0xff]
        %v361 = vld [vmem:[%s179 + $0x4c0] sm:$0xff]
        %v362 = vld [vmem:[%s179 + $0x4c8] sm:$0xff]
        %v363 = vld [vmem:[%s179 + $0x4d0] sm:$0xff]
        %v364 = vld [vmem:[%s179 + $0x4d8] sm:$0xff]
        %v365 = vld [vmem:[%s179 + $0x4e0] sm:$0xff]
        %v366 = vld [vmem:[%s179 + $0x4e8] sm:$0xff]
        %v367 = vld [vmem:[%s179 + $0x4f0] sm:$0xff]
        %v368 = vld [vmem:[%s179 + $0x4f8] sm:$0xff]
        %v369 = vld [vmem:[%s179 + $0x500] sm:$0xff]
        %v370 = vld [vmem:[%s179 + $0x508] sm:$0xff]
        %v371 = vld [vmem:[%s179 + $0x510] sm:$0xff]
        %v372 = vld [vmem:[%s179 + $0x518] sm:$0xff]
        %v373 = vld [vmem:[%s179 + $0x520] sm:$0xff]
        %v374 = vld [vmem:[%s179 + $0x528] sm:$0xff]
        %v375 = vld [vmem:[%s179 + $0x530] sm:$0xff]
        %v376 = vld [vmem:[%s179 + $0x538] sm:$0xff]
        %v377 = vld [vmem:[%s179 + $0x540] sm:$0xff]
        %v378 = vld [vmem:[%s179 + $0x548] sm:$0xff]
        %v379 = vld [vmem:[%s179 + $0x550] sm:$0xff]
        %v380 = vld [vmem:[%s179 + $0x558] sm:$0xff]
        %v381 = vld [vmem:[%s179 + $0x560] sm:$0xff]
        %v382 = vld [vmem:[%s179 + $0x568] sm:$0xff]
        %v383 = vld [vmem:[%s179 + $0x570] sm:$0xff]
        %v384 = vld [vmem:[%s179 + $0x578] sm:$0xff]
        %v385 = vld [vmem:[%s179 + $0x580] sm:$0xff]
        %v386 = vld [vmem:[%s179 + $0x588] sm:$0xff]
        %v387 = vld [vmem:[%s179 + $0x590] sm:$0xff]
        %v388 = vld [vmem:[%s179 + $0x598] sm:$0xff]
        %v389 = vld [vmem:[%s179 + $0x5a0] sm:$0xff]
        %v390 = vld [vmem:[%s179 + $0x5a8] sm:$0xff]
        %v391 = vld [vmem:[%s179 + $0x5b0] sm:$0xff]
        %v392 = vld [vmem:[%s179 + $0x5b8] sm:$0xff]
        %v393 = vld [vmem:[%s179 + $0x5c0] sm:$0xff]
        %v394 = vld [vmem:[%s179 + $0x5c8] sm:$0xff]
        %v395 = vld [vmem:[%s179 + $0x5d0] sm:$0xff]
        %v396 = vld [vmem:[%s179 + $0x5d8] sm:$0xff]
        %v397 = vld [vmem:[%s179 + $0x5e0] sm:$0xff]
        %v398 = vld [vmem:[%s179 + $0x5e8] sm:$0xff]
        %v399 = vld [vmem:[%s179 + $0x5f0] sm:$0xff]
        %v400 = vld [vmem:[%s179 + $0x5f8] sm:$0xff]
        %v401 = vld [vmem:[%s179 + $0x600] sm:$0xff]
        %v402 = vld [vmem:[%s179 + $0x608] sm:$0xff]
        %v403 = vld [vmem:[%s179 + $0x610] sm:$0xff]
        %v404 = vld [vmem:[%s179 + $0x618] sm:$0xff]
        %v405 = vld [vmem:[%s179 + $0x620] sm:$0xff]
        %v406 = vld [vmem:[%s179 + $0x628] sm:$0xff]
        %v407 = vld [vmem:[%s179 + $0x630] sm:$0xff]
        %v408 = vld [vmem:[%s179 + $0x638] sm:$0xff]
        %v409 = vld [vmem:[%s179 + $0x640] sm:$0xff]
        %v410 = vld [vmem:[%s179 + $0x648] sm:$0xff]
        %v411 = vld [vmem:[%s179 + $0x650] sm:$0xff]
        %v412 = vld [vmem:[%s179 + $0x658] sm:$0xff]
        %v413 = vld [vmem:[%s179 + $0x660] sm:$0xff]
        %v414 = vld [vmem:[%s179 + $0x668] sm:$0xff]
        %v415 = vld [vmem:[%s179 + $0x670] sm:$0xff]
        %v416 = vld [vmem:[%s179 + $0x678] sm:$0xff]
        %v417 = vld [vmem:[%s179 + $0x680] sm:$0xff]
        %v418 = vld [vmem:[%s179 + $0x688] sm:$0xff]
        %v419 = vld [vmem:[%s179 + $0x690] sm:$0xff]
        %v420 = vld [vmem:[%s179 + $0x698] sm:$0xff]
        %v421 = vld [vmem:[%s179 + $0x6a0] sm:$0xff]
        %v422 = vld [vmem:[%s179 + $0x6a8] sm:$0xff]
        %v423 = vld [vmem:[%s179 + $0x6b0] sm:$0xff]
        %v424 = vld [vmem:[%s179 + $0x6b8] sm:$0xff]
        %v425 = vld [vmem:[%s179 + $0x6c0] sm:$0xff]
        %v426 = vld [vmem:[%s179 + $0x6c8] sm:$0xff]
        %v427 = vld [vmem:[%s179 + $0x6d0] sm:$0xff]
        %v428 = vld [vmem:[%s179 + $0x6d8] sm:$0xff]
        %v429 = vld [vmem:[%s179 + $0x6e0] sm:$0xff]
        %v430 = vld [vmem:[%s179 + $0x6e8] sm:$0xff]
        %v431 = vld [vmem:[%s179 + $0x6f0] sm:$0xff]
        %v432 = vld [vmem:[%s179 + $0x6f8] sm:$0xff]
        %v433 = vld [vmem:[#allocation6] sm:$0x3]
        %v658 = vunpack.c.l.b16 %v209
        %v659 = vunpack.c.h.b16 %v209
        %v660 = vunpack.c.l.b16 %v210
        %v661 = vunpack.c.h.b16 %v210
        %v662 = vunpack.c.l.b16 %v211
        %v663 = vunpack.c.h.b16 %v211
        %v664 = vunpack.c.l.b16 %v212
        %v665 = vunpack.c.h.b16 %v212
        %v666 = vunpack.c.l.b16 %v213
        %v667 = vunpack.c.h.b16 %v213
        %v668 = vunpack.c.l.b16 %v214
        %v669 = vunpack.c.h.b16 %v214
        %v670 = vunpack.c.l.b16 %v215
        %v671 = vunpack.c.h.b16 %v215
        %v672 = vunpack.c.l.b16 %v216
        %v673 = vunpack.c.h.b16 %v216
        %v674 = vunpack.c.l.b16 %v217
        %v675 = vunpack.c.h.b16 %v217
        %v676 = vunpack.c.l.b16 %v218
        %v677 = vunpack.c.h.b16 %v218
        %v678 = vunpack.c.l.b16 %v219
        %v679 = vunpack.c.h.b16 %v219
        %v680 = vunpack.c.l.b16 %v220
        %v681 = vunpack.c.h.b16 %v220
        %v682 = vunpack.c.l.b16 %v221
        %v683 = vunpack.c.h.b16 %v221
        %v684 = vunpack.c.l.b16 %v222
        %v685 = vunpack.c.h.b16 %v222
        %v686 = vunpack.c.l.b16 %v223
        %v687 = vunpack.c.h.b16 %v223
        %v688 = vunpack.c.l.b16 %v224
        %v689 = vunpack.c.h.b16 %v224
        %v690 = vunpack.c.l.b16 %v225
        %v691 = vunpack.c.h.b16 %v225
        %v692 = vunpack.c.l.b16 %v226
        %v693 = vunpack.c.h.b16 %v226
        %v694 = vunpack.c.l.b16 %v227
        %v695 = vunpack.c.h.b16 %v227
        %v696 = vunpack.c.l.b16 %v228
        %v697 = vunpack.c.h.b16 %v228
        %v698 = vunpack.c.l.b16 %v229
        %v699 = vunpack.c.h.b16 %v229
        %v700 = vunpack.c.l.b16 %v230
        %v701 = vunpack.c.h.b16 %v230
        %v702 = vunpack.c.l.b16 %v231
        %v703 = vunpack.c.h.b16 %v231
        %v704 = vunpack.c.l.b16 %v232
        %v705 = vunpack.c.h.b16 %v232
        %v706 = vunpack.c.l.b16 %v233
        %v707 = vunpack.c.h.b16 %v233
        %v708 = vunpack.c.l.b16 %v234
        %v709 = vunpack.c.h.b16 %v234
        %v710 = vunpack.c.l.b16 %v235
        %v711 = vunpack.c.h.b16 %v235
        %v712 = vunpack.c.l.b16 %v236
        %v713 = vunpack.c.h.b16 %v236
        %v714 = vunpack.c.l.b16 %v237
        %v715 = vunpack.c.h.b16 %v237
        %v716 = vunpack.c.l.b16 %v238
        %v717 = vunpack.c.h.b16 %v238
        %v718 = vunpack.c.l.b16 %v239
        %v719 = vunpack.c.h.b16 %v239
        %v720 = vunpack.c.l.b16 %v240
        %v721 = vunpack.c.h.b16 %v240
        %v722 = vunpack.c.l.b16 %v241
        %v723 = vunpack.c.h.b16 %v241
        %v724 = vunpack.c.l.b16 %v242
        %v725 = vunpack.c.h.b16 %v242
        %v726 = vunpack.c.l.b16 %v243
        %v727 = vunpack.c.h.b16 %v243
        %v728 = vunpack.c.l.b16 %v244
        %v729 = vunpack.c.h.b16 %v244
        %v730 = vunpack.c.l.b16 %v245
        %v731 = vunpack.c.h.b16 %v245
        %v732 = vunpack.c.l.b16 %v246
        %v733 = vunpack.c.h.b16 %v246
        %v734 = vunpack.c.l.b16 %v247
        %v735 = vunpack.c.h.b16 %v247
        %v736 = vunpack.c.l.b16 %v248
        %v737 = vunpack.c.h.b16 %v248
        %v738 = vunpack.c.l.b16 %v249
        %v739 = vunpack.c.h.b16 %v249
        %v740 = vunpack.c.l.b16 %v250
        %v741 = vunpack.c.h.b16 %v250
        %v742 = vunpack.c.l.b16 %v251
        %v743 = vunpack.c.h.b16 %v251
        %v744 = vunpack.c.l.b16 %v252
        %v745 = vunpack.c.h.b16 %v252
        %v746 = vunpack.c.l.b16 %v253
        %v747 = vunpack.c.h.b16 %v253
        %v748 = vunpack.c.l.b16 %v254
        %v749 = vunpack.c.h.b16 %v254
        %v750 = vunpack.c.l.b16 %v255
        %v751 = vunpack.c.h.b16 %v255
        %v752 = vunpack.c.l.b16 %v256
        %v753 = vunpack.c.h.b16 %v256
        %v754 = vunpack.c.l.b16 %v257
        %v755 = vunpack.c.h.b16 %v257
        %v756 = vunpack.c.l.b16 %v258
        %v757 = vunpack.c.h.b16 %v258
        %v758 = vunpack.c.l.b16 %v259
        %v759 = vunpack.c.h.b16 %v259
        %v760 = vunpack.c.l.b16 %v260
        %v761 = vunpack.c.h.b16 %v260
        %v762 = vunpack.c.l.b16 %v261
        %v763 = vunpack.c.h.b16 %v261
        %v764 = vunpack.c.l.b16 %v262
        %v765 = vunpack.c.h.b16 %v262
        %v766 = vunpack.c.l.b16 %v263
        %v767 = vunpack.c.h.b16 %v263
        %v768 = vunpack.c.l.b16 %v264
        %v769 = vunpack.c.h.b16 %v264
        %v770 = vunpack.c.l.b16 %v265
        %v771 = vunpack.c.h.b16 %v265
        %v772 = vunpack.c.l.b16 %v266
        %v773 = vunpack.c.h.b16 %v266
        %v774 = vunpack.c.l.b16 %v267
        %v775 = vunpack.c.h.b16 %v267
        %v776 = vunpack.c.l.b16 %v268
        %v777 = vunpack.c.h.b16 %v268
        %v778 = vunpack.c.l.b16 %v269
        %v779 = vunpack.c.h.b16 %v269
        %v780 = vunpack.c.l.b16 %v270
        %v781 = vunpack.c.h.b16 %v270
        %v782 = vunpack.c.l.b16 %v271
        %v783 = vunpack.c.h.b16 %v271
        %v784 = vunpack.c.l.b16 %v272
        %v785 = vunpack.c.h.b16 %v272
        %v786 = vunpack.c.l.b16 %v273
        %v787 = vunpack.c.h.b16 %v273
        %v788 = vunpack.c.l.b16 %v274
        %v789 = vunpack.c.h.b16 %v274
        %v790 = vunpack.c.l.b16 %v275
        %v791 = vunpack.c.h.b16 %v275
        %v792 = vunpack.c.l.b16 %v276
        %v793 = vunpack.c.h.b16 %v276
        %v794 = vunpack.c.l.b16 %v277
        %v795 = vunpack.c.h.b16 %v277
        %v796 = vunpack.c.l.b16 %v278
        %v797 = vunpack.c.h.b16 %v278
        %v798 = vunpack.c.l.b16 %v279
        %v799 = vunpack.c.h.b16 %v279
        %v800 = vunpack.c.l.b16 %v280
        %v801 = vunpack.c.h.b16 %v280
        %v802 = vunpack.c.l.b16 %v281
        %v803 = vunpack.c.h.b16 %v281
        %v804 = vunpack.c.l.b16 %v282
        %v805 = vunpack.c.h.b16 %v282
        %v806 = vunpack.c.l.b16 %v283
        %v807 = vunpack.c.h.b16 %v283
        %v808 = vunpack.c.l.b16 %v284
        %v809 = vunpack.c.h.b16 %v284
        %v810 = vunpack.c.l.b16 %v285
        %v811 = vunpack.c.h.b16 %v285
        %v812 = vunpack.c.l.b16 %v286
        %v813 = vunpack.c.h.b16 %v286
        %v814 = vunpack.c.l.b16 %v287
        %v815 = vunpack.c.h.b16 %v287
        %v816 = vunpack.c.l.b16 %v288
        %v817 = vunpack.c.h.b16 %v288
        %v818 = vunpack.c.l.b16 %v289
        %v819 = vunpack.c.h.b16 %v289
        %v820 = vunpack.c.l.b16 %v290
        %v821 = vunpack.c.h.b16 %v290
        %v822 = vunpack.c.l.b16 %v291
        %v823 = vunpack.c.h.b16 %v291
        %v824 = vunpack.c.l.b16 %v292
        %v825 = vunpack.c.h.b16 %v292
        %v826 = vunpack.c.l.b16 %v293
        %v827 = vunpack.c.h.b16 %v293
        %v828 = vunpack.c.l.b16 %v294
        %v829 = vunpack.c.h.b16 %v294
        %v830 = vunpack.c.l.b16 %v295
        %v831 = vunpack.c.h.b16 %v295
        %v832 = vunpack.c.l.b16 %v296
        %v833 = vunpack.c.h.b16 %v296
        %v834 = vunpack.c.l.b16 %v297
        %v835 = vunpack.c.h.b16 %v297
        %v836 = vunpack.c.l.b16 %v298
        %v837 = vunpack.c.h.b16 %v298
        %v838 = vunpack.c.l.b16 %v299
        %v839 = vunpack.c.h.b16 %v299
        %v840 = vunpack.c.l.b16 %v300
        %v841 = vunpack.c.h.b16 %v300
        %v842 = vunpack.c.l.b16 %v301
        %v843 = vunpack.c.h.b16 %v301
        %v844 = vunpack.c.l.b16 %v302
        %v845 = vunpack.c.h.b16 %v302
        %v846 = vunpack.c.l.b16 %v303
        %v847 = vunpack.c.h.b16 %v303
        %v848 = vunpack.c.l.b16 %v304
        %v849 = vunpack.c.h.b16 %v304
        %v850 = vunpack.c.l.b16 %v305
        %v851 = vunpack.c.h.b16 %v305
        %v852 = vunpack.c.l.b16 %v306
        %v853 = vunpack.c.h.b16 %v306
        %v854 = vunpack.c.l.b16 %v307
        %v855 = vunpack.c.h.b16 %v307
        %v856 = vunpack.c.l.b16 %v308
        %v857 = vunpack.c.h.b16 %v308
        %v858 = vunpack.c.l.b16 %v309
        %v859 = vunpack.c.h.b16 %v309
        %v860 = vunpack.c.l.b16 %v310
        %v861 = vunpack.c.h.b16 %v310
        %v862 = vunpack.c.l.b16 %v311
        %v863 = vunpack.c.h.b16 %v311
        %v864 = vunpack.c.l.b16 %v312
        %v865 = vunpack.c.h.b16 %v312
        %v866 = vunpack.c.l.b16 %v313
        %v867 = vunpack.c.h.b16 %v313
        %v868 = vunpack.c.l.b16 %v314
        %v869 = vunpack.c.h.b16 %v314
        %v870 = vunpack.c.l.b16 %v315
        %v871 = vunpack.c.h.b16 %v315
        %v872 = vunpack.c.l.b16 %v316
        %v873 = vunpack.c.h.b16 %v316
        %v874 = vunpack.c.l.b16 %v317
        %v875 = vunpack.c.h.b16 %v317
        %v876 = vunpack.c.l.b16 %v318
        %v877 = vunpack.c.h.b16 %v318
        %v878 = vunpack.c.l.b16 %v319
        %v879 = vunpack.c.h.b16 %v319
        %v880 = vunpack.c.l.b16 %v320
        %v881 = vunpack.c.h.b16 %v320
        %v882 = vunpack.c.l.b16 %v321
        %v883 = vunpack.c.h.b16 %v321
        %v884 = vunpack.c.l.b16 %v322
        %v885 = vunpack.c.h.b16 %v322
        %v886 = vunpack.c.l.b16 %v323
        %v887 = vunpack.c.h.b16 %v323
        %v888 = vunpack.c.l.b16 %v324
        %v889 = vunpack.c.h.b16 %v324
        %v890 = vunpack.c.l.b16 %v325
        %v891 = vunpack.c.h.b16 %v325
        %v892 = vunpack.c.l.b16 %v326
        %v893 = vunpack.c.h.b16 %v326
        %v894 = vunpack.c.l.b16 %v327
        %v895 = vunpack.c.h.b16 %v327
        %v896 = vunpack.c.l.b16 %v328
        %v897 = vunpack.c.h.b16 %v328
        %v898 = vunpack.c.l.b16 %v329
        %v899 = vunpack.c.h.b16 %v329
        %v900 = vunpack.c.l.b16 %v330
        %v901 = vunpack.c.h.b16 %v330
        %v902 = vunpack.c.l.b16 %v331
        %v903 = vunpack.c.h.b16 %v331
        %v904 = vunpack.c.l.b16 %v332
        %v905 = vunpack.c.h.b16 %v332
        %v906 = vunpack.c.l.b16 %v333
        %v907 = vunpack.c.h.b16 %v333
        %v908 = vunpack.c.l.b16 %v334
        %v909 = vunpack.c.h.b16 %v334
        %v910 = vunpack.c.l.b16 %v335
        %v911 = vunpack.c.h.b16 %v335
        %v912 = vunpack.c.l.b16 %v336
        %v913 = vunpack.c.h.b16 %v336
        %v914 = vunpack.c.l.b16 %v337
        %v915 = vunpack.c.h.b16 %v337
        %v916 = vunpack.c.l.b16 %v338
        %v917 = vunpack.c.h.b16 %v338
        %v918 = vunpack.c.l.b16 %v339
        %v919 = vunpack.c.h.b16 %v339
        %v920 = vunpack.c.l.b16 %v340
        %v921 = vunpack.c.h.b16 %v340
        %v922 = vunpack.c.l.b16 %v341
        %v923 = vunpack.c.h.b16 %v341
        %v924 = vunpack.c.l.b16 %v342
        %v925 = vunpack.c.h.b16 %v342
        %v926 = vunpack.c.l.b16 %v343
        %v927 = vunpack.c.h.b16 %v343
        %v928 = vunpack.c.l.b16 %v344
        %v929 = vunpack.c.h.b16 %v344
        %v930 = vunpack.c.l.b16 %v345
        %v931 = vunpack.c.h.b16 %v345
        %v932 = vunpack.c.l.b16 %v346
        %v933 = vunpack.c.h.b16 %v346
        %v934 = vunpack.c.l.b16 %v347
        %v935 = vunpack.c.h.b16 %v347
        %v936 = vunpack.c.l.b16 %v348
        %v937 = vunpack.c.h.b16 %v348
        %v938 = vunpack.c.l.b16 %v349
        %v939 = vunpack.c.h.b16 %v349
        %v940 = vunpack.c.l.b16 %v350
        %v941 = vunpack.c.h.b16 %v350
        %v942 = vunpack.c.l.b16 %v351
        %v943 = vunpack.c.h.b16 %v351
        %v944 = vunpack.c.l.b16 %v352
        %v945 = vunpack.c.h.b16 %v352
        %v946 = vunpack.c.l.b16 %v353
        %v947 = vunpack.c.h.b16 %v353
        %v948 = vunpack.c.l.b16 %v354
        %v949 = vunpack.c.h.b16 %v354
        %v950 = vunpack.c.l.b16 %v355
        %v951 = vunpack.c.h.b16 %v355
        %v952 = vunpack.c.l.b16 %v356
        %v953 = vunpack.c.h.b16 %v356
        %v954 = vunpack.c.l.b16 %v357
        %v955 = vunpack.c.h.b16 %v357
        %v956 = vunpack.c.l.b16 %v358
        %v957 = vunpack.c.h.b16 %v358
        %v958 = vunpack.c.l.b16 %v359
        %v959 = vunpack.c.h.b16 %v359
        %v960 = vunpack.c.l.b16 %v360
        %v961 = vunpack.c.h.b16 %v360
        %v962 = vunpack.c.l.b16 %v361
        %v963 = vunpack.c.h.b16 %v361
        %v964 = vunpack.c.l.b16 %v362
        %v965 = vunpack.c.h.b16 %v362
        %v966 = vunpack.c.l.b16 %v363
        %v967 = vunpack.c.h.b16 %v363
        %v968 = vunpack.c.l.b16 %v364
        %v969 = vunpack.c.h.b16 %v364
        %v970 = vunpack.c.l.b16 %v365
        %v971 = vunpack.c.h.b16 %v365
        %v972 = vunpack.c.l.b16 %v366
        %v973 = vunpack.c.h.b16 %v366
        %v974 = vunpack.c.l.b16 %v367
        %v975 = vunpack.c.h.b16 %v367
        %v976 = vunpack.c.l.b16 %v368
        %v977 = vunpack.c.h.b16 %v368
        %v978 = vunpack.c.l.b16 %v369
        %v979 = vunpack.c.h.b16 %v369
        %v980 = vunpack.c.l.b16 %v370
        %v981 = vunpack.c.h.b16 %v370
        %v982 = vunpack.c.l.b16 %v371
        %v983 = vunpack.c.h.b16 %v371
        %v984 = vunpack.c.l.b16 %v372
        %v985 = vunpack.c.h.b16 %v372
        %v986 = vunpack.c.l.b16 %v373
        %v987 = vunpack.c.h.b16 %v373
        %v988 = vunpack.c.l.b16 %v374
        %v989 = vunpack.c.h.b16 %v374
        %v990 = vunpack.c.l.b16 %v375
        %v991 = vunpack.c.h.b16 %v375
        %v992 = vunpack.c.l.b16 %v376
        %v993 = vunpack.c.h.b16 %v376
        %v994 = vunpack.c.l.b16 %v377
        %v995 = vunpack.c.h.b16 %v377
        %v996 = vunpack.c.l.b16 %v378
        %v997 = vunpack.c.h.b16 %v378
        %v998 = vunpack.c.l.b16 %v379
        %v999 = vunpack.c.h.b16 %v379
        %v1000 = vunpack.c.l.b16 %v380
        %v1001 = vunpack.c.h.b16 %v380
        %v1002 = vunpack.c.l.b16 %v381
        %v1003 = vunpack.c.h.b16 %v381
        %v1004 = vunpack.c.l.b16 %v382
        %v1005 = vunpack.c.h.b16 %v382
        %v1006 = vunpack.c.l.b16 %v383
        %v1007 = vunpack.c.h.b16 %v383
        %v1008 = vunpack.c.l.b16 %v384
        %v1009 = vunpack.c.h.b16 %v384
        %v1010 = vunpack.c.l.b16 %v385
        %v1011 = vunpack.c.h.b16 %v385
        %v1012 = vunpack.c.l.b16 %v386
        %v1013 = vunpack.c.h.b16 %v386
        %v1014 = vunpack.c.l.b16 %v387
        %v1015 = vunpack.c.h.b16 %v387
        %v1016 = vunpack.c.l.b16 %v388
        %v1017 = vunpack.c.h.b16 %v388
        %v1018 = vunpack.c.l.b16 %v389
        %v1019 = vunpack.c.h.b16 %v389
        %v1020 = vunpack.c.l.b16 %v390
        %v1021 = vunpack.c.h.b16 %v390
        %v1022 = vunpack.c.l.b16 %v391
        %v1023 = vunpack.c.h.b16 %v391
        %v1024 = vunpack.c.l.b16 %v392
        %v1025 = vunpack.c.h.b16 %v392
        %v1026 = vunpack.c.l.b16 %v393
        %v1027 = vunpack.c.h.b16 %v393
        %v1028 = vunpack.c.l.b16 %v394
        %v1029 = vunpack.c.h.b16 %v394
        %v1030 = vunpack.c.l.b16 %v395
        %v1031 = vunpack.c.h.b16 %v395
        %v1032 = vunpack.c.l.b16 %v396
        %v1033 = vunpack.c.h.b16 %v396
        %v1034 = vunpack.c.l.b16 %v397
        %v1035 = vunpack.c.h.b16 %v397
        %v1036 = vunpack.c.l.b16 %v398
        %v1037 = vunpack.c.h.b16 %v398
        %v1038 = vunpack.c.l.b16 %v399
        %v1039 = vunpack.c.h.b16 %v399
        %v1040 = vunpack.c.l.b16 %v400
        %v1041 = vunpack.c.h.b16 %v400
        %v1042 = vunpack.c.l.b16 %v401
        %v1043 = vunpack.c.h.b16 %v401
        %v1044 = vunpack.c.l.b16 %v402
        %v1045 = vunpack.c.h.b16 %v402
        %v1046 = vunpack.c.l.b16 %v403
        %v1047 = vunpack.c.h.b16 %v403
        %v1048 = vunpack.c.l.b16 %v404
        %v1049 = vunpack.c.h.b16 %v404
        %v1050 = vunpack.c.l.b16 %v405
        %v1051 = vunpack.c.h.b16 %v405
        %v1052 = vunpack.c.l.b16 %v406
        %v1053 = vunpack.c.h.b16 %v406
        %v1054 = vunpack.c.l.b16 %v407
        %v1055 = vunpack.c.h.b16 %v407
        %v1056 = vunpack.c.l.b16 %v408
        %v1057 = vunpack.c.h.b16 %v408
        %v1058 = vunpack.c.l.b16 %v409
        %v1059 = vunpack.c.h.b16 %v409
        %v1060 = vunpack.c.l.b16 %v410
        %v1061 = vunpack.c.h.b16 %v410
        %v1062 = vunpack.c.l.b16 %v411
        %v1063 = vunpack.c.h.b16 %v411
        %v1064 = vunpack.c.l.b16 %v412
        %v1065 = vunpack.c.h.b16 %v412
        %v1066 = vunpack.c.l.b16 %v413
        %v1067 = vunpack.c.h.b16 %v413
        %v1068 = vunpack.c.l.b16 %v414
        %v1069 = vunpack.c.h.b16 %v414
        %v1070 = vunpack.c.l.b16 %v415
        %v1071 = vunpack.c.h.b16 %v415
        %v1072 = vunpack.c.l.b16 %v416
        %v1073 = vunpack.c.h.b16 %v416
        %v1074 = vunpack.c.l.b16 %v417
        %v1075 = vunpack.c.h.b16 %v417
        %v1076 = vunpack.c.l.b16 %v418
        %v1077 = vunpack.c.h.b16 %v418
        %v1078 = vunpack.c.l.b16 %v419
        %v1079 = vunpack.c.h.b16 %v419
        %v1080 = vunpack.c.l.b16 %v420
        %v1081 = vunpack.c.h.b16 %v420
        %v1082 = vunpack.c.l.b16 %v421
        %v1083 = vunpack.c.h.b16 %v421
        %v1084 = vunpack.c.l.b16 %v422
        %v1085 = vunpack.c.h.b16 %v422
        %v1086 = vunpack.c.l.b16 %v423
        %v1087 = vunpack.c.h.b16 %v423
        %v1088 = vunpack.c.l.b16 %v424
        %v1089 = vunpack.c.h.b16 %v424
        %v1090 = vunpack.c.l.b16 %v425
        %v1091 = vunpack.c.h.b16 %v425
        %v1092 = vunpack.c.l.b16 %v426
        %v1093 = vunpack.c.h.b16 %v426
        %v1094 = vunpack.c.l.b16 %v427
        %v1095 = vunpack.c.h.b16 %v427
        %v1096 = vunpack.c.l.b16 %v428
        %v1097 = vunpack.c.h.b16 %v428
        %v1098 = vunpack.c.l.b16 %v429
        %v1099 = vunpack.c.h.b16 %v429
        %v1100 = vunpack.c.l.b16 %v430
        %v1101 = vunpack.c.h.b16 %v430
        %v1102 = vunpack.c.l.b16 %v431
        %v1103 = vunpack.c.h.b16 %v431
        %v1104 = vunpack.c.l.b16 %v432
        %v1105 = vunpack.c.h.b16 %v432
        %v1106 = vpack.c.b16 %v690, %v658
        %v1107 = vpack.c.b16 %v691, %v659
        %v1108 = vpack.c.b16 %v692, %v660
        %v1109 = vpack.c.b16 %v693, %v661
        %v1110 = vpack.c.b16 %v694, %v662
        %v1111 = vpack.c.b16 %v695, %v663
        %v1112 = vpack.c.b16 %v696, %v664
        %v1113 = vpack.c.b16 %v697, %v665
        %v1114 = vpack.c.b16 %v698, %v666
        %v1115 = vpack.c.b16 %v699, %v667
        %v1116 = vpack.c.b16 %v700, %v668
        %v1117 = vpack.c.b16 %v701, %v669
        %v1118 = vpack.c.b16 %v702, %v670
        %v1119 = vpack.c.b16 %v703, %v671
        %v1120 = vpack.c.b16 %v704, %v672
        %v1121 = vpack.c.b16 %v705, %v673
        %v1122 = vpack.c.b16 %v706, %v674
        %v1123 = vpack.c.b16 %v707, %v675
        %v1124 = vpack.c.b16 %v708, %v676
        %v1125 = vpack.c.b16 %v709, %v677
        %v1126 = vpack.c.b16 %v710, %v678
        %v1127 = vpack.c.b16 %v711, %v679
        %v1128 = vpack.c.b16 %v712, %v680
        %v1129 = vpack.c.b16 %v713, %v681
        %v1130 = vpack.c.b16 %v714, %v682
        %v1131 = vpack.c.b16 %v715, %v683
        %v1132 = vpack.c.b16 %v716, %v684
        %v1133 = vpack.c.b16 %v717, %v685
        %v1134 = vpack.c.b16 %v718, %v686
        %v1135 = vpack.c.b16 %v719, %v687
        %v1136 = vpack.c.b16 %v720, %v688
        %v1137 = vpack.c.b16 %v721, %v689
        %v1138 = vpack.c.b16 %v754, %v722
        %v1139 = vpack.c.b16 %v755, %v723
        %v1140 = vpack.c.b16 %v756, %v724
        %v1141 = vpack.c.b16 %v757, %v725
        %v1142 = vpack.c.b16 %v758, %v726
        %v1143 = vpack.c.b16 %v759, %v727
        %v1144 = vpack.c.b16 %v760, %v728
        %v1145 = vpack.c.b16 %v761, %v729
        %v1146 = vpack.c.b16 %v762, %v730
        %v1147 = vpack.c.b16 %v763, %v731
        %v1148 = vpack.c.b16 %v764, %v732
        %v1149 = vpack.c.b16 %v765, %v733
        %v1150 = vpack.c.b16 %v766, %v734
        %v1151 = vpack.c.b16 %v767, %v735
        %v1152 = vpack.c.b16 %v768, %v736
        %v1153 = vpack.c.b16 %v769, %v737
        %v1154 = vpack.c.b16 %v770, %v738
        %v1155 = vpack.c.b16 %v771, %v739
        %v1156 = vpack.c.b16 %v772, %v740
        %v1157 = vpack.c.b16 %v773, %v741
        %v1158 = vpack.c.b16 %v774, %v742
        %v1159 = vpack.c.b16 %v775, %v743
        %v1160 = vpack.c.b16 %v776, %v744
        %v1161 = vpack.c.b16 %v777, %v745
        %v1162 = vpack.c.b16 %v778, %v746
        %v1163 = vpack.c.b16 %v779, %v747
        %v1164 = vpack.c.b16 %v780, %v748
        %v1165 = vpack.c.b16 %v781, %v749
        %v1166 = vpack.c.b16 %v782, %v750
        %v1167 = vpack.c.b16 %v783, %v751
        %v1168 = vpack.c.b16 %v784, %v752
        %v1169 = vpack.c.b16 %v785, %v753
        %v1170 = vpack.c.b16 %v818, %v786
        %v1171 = vpack.c.b16 %v819, %v787
        %v1172 = vpack.c.b16 %v820, %v788
        %v1173 = vpack.c.b16 %v821, %v789
        %v1174 = vpack.c.b16 %v822, %v790
        %v1175 = vpack.c.b16 %v823, %v791
        %v1176 = vpack.c.b16 %v824, %v792
        %v1177 = vpack.c.b16 %v825, %v793
        %v1178 = vpack.c.b16 %v826, %v794
        %v1179 = vpack.c.b16 %v827, %v795
        %v1180 = vpack.c.b16 %v828, %v796
        %v1181 = vpack.c.b16 %v829, %v797
        %v1182 = vpack.c.b16 %v830, %v798
        %v1183 = vpack.c.b16 %v831, %v799
        %v1184 = vpack.c.b16 %v832, %v800
        %v1185 = vpack.c.b16 %v833, %v801
        %v1186 = vpack.c.b16 %v834, %v802
        %v1187 = vpack.c.b16 %v835, %v803
        %v1188 = vpack.c.b16 %v836, %v804
        %v1189 = vpack.c.b16 %v837, %v805
        %v1190 = vpack.c.b16 %v838, %v806
        %v1191 = vpack.c.b16 %v839, %v807
        %v1192 = vpack.c.b16 %v840, %v808
        %v1193 = vpack.c.b16 %v841, %v809
        %v1194 = vpack.c.b16 %v842, %v810
        %v1195 = vpack.c.b16 %v843, %v811
        %v1196 = vpack.c.b16 %v844, %v812
        %v1197 = vpack.c.b16 %v845, %v813
        %v1198 = vpack.c.b16 %v846, %v814
        %v1199 = vpack.c.b16 %v847, %v815
        %v1200 = vpack.c.b16 %v848, %v816
        %v1201 = vpack.c.b16 %v849, %v817
        %v1202 = vpack.c.b16 %v882, %v850
        %v1203 = vpack.c.b16 %v883, %v851
        %v1204 = vpack.c.b16 %v884, %v852
        %v1205 = vpack.c.b16 %v885, %v853
        %v1206 = vpack.c.b16 %v886, %v854
        %v1207 = vpack.c.b16 %v887, %v855
        %v1208 = vpack.c.b16 %v888, %v856
        %v1209 = vpack.c.b16 %v889, %v857
        %v1210 = vpack.c.b16 %v890, %v858
        %v1211 = vpack.c.b16 %v891, %v859
        %v1212 = vpack.c.b16 %v892, %v860
        %v1213 = vpack.c.b16 %v893, %v861
        %v1214 = vpack.c.b16 %v894, %v862
        %v1215 = vpack.c.b16 %v895, %v863
        %v1216 = vpack.c.b16 %v896, %v864
        %v1217 = vpack.c.b16 %v897, %v865
        %v1218 = vpack.c.b16 %v898, %v866
        %v1219 = vpack.c.b16 %v899, %v867
        %v1220 = vpack.c.b16 %v900, %v868
        %v1221 = vpack.c.b16 %v901, %v869
        %v1222 = vpack.c.b16 %v902, %v870
        %v1223 = vpack.c.b16 %v903, %v871
        %v1224 = vpack.c.b16 %v904, %v872
        %v1225 = vpack.c.b16 %v905, %v873
        %v1226 = vpack.c.b16 %v906, %v874
        %v1227 = vpack.c.b16 %v907, %v875
        %v1228 = vpack.c.b16 %v908, %v876
        %v1229 = vpack.c.b16 %v909, %v877
        %v1230 = vpack.c.b16 %v910, %v878
        %v1231 = vpack.c.b16 %v911, %v879
        %v1232 = vpack.c.b16 %v912, %v880
        %v1233 = vpack.c.b16 %v913, %v881
        %v1234 = vpack.c.b16 %v946, %v914
        %v1235 = vpack.c.b16 %v947, %v915
        %v1236 = vpack.c.b16 %v948, %v916
        %v1237 = vpack.c.b16 %v949, %v917
        %v1238 = vpack.c.b16 %v950, %v918
        %v1239 = vpack.c.b16 %v951, %v919
        %v1240 = vpack.c.b16 %v952, %v920
        %v1241 = vpack.c.b16 %v953, %v921
        %v1242 = vpack.c.b16 %v954, %v922
        %v1243 = vpack.c.b16 %v955, %v923
        %v1244 = vpack.c.b16 %v956, %v924
        %v1245 = vpack.c.b16 %v957, %v925
        %v1246 = vpack.c.b16 %v958, %v926
        %v1247 = vpack.c.b16 %v959, %v927
        %v1248 = vpack.c.b16 %v960, %v928
        %v1249 = vpack.c.b16 %v961, %v929
        %v1250 = vpack.c.b16 %v962, %v930
        %v1251 = vpack.c.b16 %v963, %v931
        %v1252 = vpack.c.b16 %v964, %v932
        %v1253 = vpack.c.b16 %v965, %v933
        %v1254 = vpack.c.b16 %v966, %v934
        %v1255 = vpack.c.b16 %v967, %v935
        %v1256 = vpack.c.b16 %v968, %v936
        %v1257 = vpack.c.b16 %v969, %v937
        %v1258 = vpack.c.b16 %v970, %v938
        %v1259 = vpack.c.b16 %v971, %v939
        %v1260 = vpack.c.b16 %v972, %v940
        %v1261 = vpack.c.b16 %v973, %v941
        %v1262 = vpack.c.b16 %v974, %v942
        %v1263 = vpack.c.b16 %v975, %v943
        %v1264 = vpack.c.b16 %v976, %v944
        %v1265 = vpack.c.b16 %v977, %v945
        %v1266 = vpack.c.b16 %v1010, %v978
        %v1267 = vpack.c.b16 %v1011, %v979
        %v1268 = vpack.c.b16 %v1012, %v980
        %v1269 = vpack.c.b16 %v1013, %v981
        %v1270 = vpack.c.b16 %v1014, %v982
        %v1271 = vpack.c.b16 %v1015, %v983
        %v1272 = vpack.c.b16 %v1016, %v984
        %v1273 = vpack.c.b16 %v1017, %v985
        %v1274 = vpack.c.b16 %v1018, %v986
        %v1275 = vpack.c.b16 %v1019, %v987
        %v1276 = vpack.c.b16 %v1020, %v988
        %v1277 = vpack.c.b16 %v1021, %v989
        %v1278 = vpack.c.b16 %v1022, %v990
        %v1279 = vpack.c.b16 %v1023, %v991
        %v1280 = vpack.c.b16 %v1024, %v992
        %v1281 = vpack.c.b16 %v1025, %v993
        %v1282 = vpack.c.b16 %v1026, %v994
        %v1283 = vpack.c.b16 %v1027, %v995
        %v1284 = vpack.c.b16 %v1028, %v996
        %v1285 = vpack.c.b16 %v1029, %v997
        %v1286 = vpack.c.b16 %v1030, %v998
        %v1287 = vpack.c.b16 %v1031, %v999
        %v1288 = vpack.c.b16 %v1032, %v1000
        %v1289 = vpack.c.b16 %v1033, %v1001
        %v1290 = vpack.c.b16 %v1034, %v1002
        %v1291 = vpack.c.b16 %v1035, %v1003
        %v1292 = vpack.c.b16 %v1036, %v1004
        %v1293 = vpack.c.b16 %v1037, %v1005
        %v1294 = vpack.c.b16 %v1038, %v1006
        %v1295 = vpack.c.b16 %v1039, %v1007
        %v1296 = vpack.c.b16 %v1040, %v1008
        %v1297 = vpack.c.b16 %v1041, %v1009
        %v1298 = vpack.c.b16 %v1074, %v1042
        %v1299 = vpack.c.b16 %v1075, %v1043
        %v1300 = vpack.c.b16 %v1076, %v1044
        %v1301 = vpack.c.b16 %v1077, %v1045
        %v1302 = vpack.c.b16 %v1078, %v1046
        %v1303 = vpack.c.b16 %v1079, %v1047
        %v1304 = vpack.c.b16 %v1080, %v1048
        %v1305 = vpack.c.b16 %v1081, %v1049
        %v1306 = vpack.c.b16 %v1082, %v1050
        %v1307 = vpack.c.b16 %v1083, %v1051
        %v1308 = vpack.c.b16 %v1084, %v1052
        %v1309 = vpack.c.b16 %v1085, %v1053
        %v1310 = vpack.c.b16 %v1086, %v1054
        %v1311 = vpack.c.b16 %v1087, %v1055
        %v1312 = vpack.c.b16 %v1088, %v1056
        %v1313 = vpack.c.b16 %v1089, %v1057
        %v1314 = vpack.c.b16 %v1090, %v1058
        %v1315 = vpack.c.b16 %v1091, %v1059
        %v1316 = vpack.c.b16 %v1092, %v1060
        %v1317 = vpack.c.b16 %v1093, %v1061
        %v1318 = vpack.c.b16 %v1094, %v1062
        %v1319 = vpack.c.b16 %v1095, %v1063
        %v1320 = vpack.c.b16 %v1096, %v1064
        %v1321 = vpack.c.b16 %v1097, %v1065
        %v1322 = vpack.c.b16 %v1098, %v1066
        %v1323 = vpack.c.b16 %v1099, %v1067
        %v1324 = vpack.c.b16 %v1100, %v1068
        %v1325 = vpack.c.b16 %v1101, %v1069
        %v1326 = vpack.c.b16 %v1102, %v1070
        %v1327 = vpack.c.b16 %v1103, %v1071
        %v1328 = vpack.c.b16 %v1104, %v1072
        %v1329 = vpack.c.b16 %v1105, %v1073
        %vm1554 = vcmask 916480
        %v1556 = vsel %vm1554, %v433, 0
        %1558 = vmatpush.bf16.msra.mxu0 0
        %1559 = vmatpush.bf16.msra.mxu0 %v1298
        %1560 = vmatpush.bf16.msra.mxu0 %v1266
        %1561 = vmatpush.bf16.msra.mxu0 %v1234
        %1562 = vmatpush.bf16.msra.mxu0 %v1202
        %1563 = vmatpush.bf16.msra.mxu0 %v1170
        %1564 = vmatpush.bf16.msra.mxu0 %v1138
        %1565 = vmatpush.bf16.msra.mxu0 %v1106
        %1566 = vmatmul.bf16.gmra.mxu0 %v1556
        %v1567 = vpop.f32.mrf.mxu0
        %v1568 = vadd.f32 0.0, %v1567
        %v1569 = vpop.f32.mrf.mxu0
        %1570 = vdwg.mxu0
        %1571 = vmatpush.bf16.msra.mxu0 0
        %1572 = vmatpush.bf16.msra.mxu0 %v1299
        %1573 = vmatpush.bf16.msra.mxu0 %v1267
        %1574 = vmatpush.bf16.msra.mxu0 %v1235
        %1575 = vmatpush.bf16.msra.mxu0 %v1203
        %1576 = vmatpush.bf16.msra.mxu0 %v1171
        %1577 = vmatpush.bf16.msra.mxu0 %v1139
        %1578 = vmatpush.bf16.msra.mxu0 %v1107
        %1579 = vmatmul.bf16.gmra.mxu0 %v1556
        %v1580 = vpop.f32.mrf.mxu0
        %v1581 = vadd.f32 0.0, %v1580
        %v1582 = vpop.f32.mrf.mxu0
        %1583 = vdwg.mxu0
        %1584 = vmatpush.bf16.msra.mxu0 0
        %1585 = vmatpush.bf16.msra.mxu0 %v1300
        %1586 = vmatpush.bf16.msra.mxu0 %v1268
        %1587 = vmatpush.bf16.msra.mxu0 %v1236
        %1588 = vmatpush.bf16.msra.mxu0 %v1204
        %1589 = vmatpush.bf16.msra.mxu0 %v1172
        %1590 = vmatpush.bf16.msra.mxu0 %v1140
        %1591 = vmatpush.bf16.msra.mxu0 %v1108
        %1592 = vmatmul.bf16.gmra.mxu0 %v1556
        %v1593 = vpop.f32.mrf.mxu0
        %v1594 = vadd.f32 0.0, %v1593
        %v1595 = vpop.f32.mrf.mxu0
        %1596 = vdwg.mxu0
        %1597 = vmatpush.bf16.msra.mxu0 0
        %1598 = vmatpush.bf16.msra.mxu0 %v1301
        %1599 = vmatpush.bf16.msra.mxu0 %v1269
        %1600 = vmatpush.bf16.msra.mxu0 %v1237
        %1601 = vmatpush.bf16.msra.mxu0 %v1205
        %1602 = vmatpush.bf16.msra.mxu0 %v1173
        %1603 = vmatpush.bf16.msra.mxu0 %v1141
        %1604 = vmatpush.bf16.msra.mxu0 %v1109
        %1605 = vmatmul.bf16.gmra.mxu0 %v1556
        %v1606 = vpop.f32.mrf.mxu0
        %v1607 = vadd.f32 0.0, %v1606
        %v1608 = vpop.f32.mrf.mxu0
        %1609 = vdwg.mxu0
        %1610 = vmatpush.bf16.msra.mxu0 0
        %1611 = vmatpush.bf16.msra.mxu0 %v1302
        %1612 = vmatpush.bf16.msra.mxu0 %v1270
        %1613 = vmatpush.bf16.msra.mxu0 %v1238
        %1614 = vmatpush.bf16.msra.mxu0 %v1206
        %1615 = vmatpush.bf16.msra.mxu0 %v1174
        %1616 = vmatpush.bf16.msra.mxu0 %v1142
        %1617 = vmatpush.bf16.msra.mxu0 %v1110
        %1618 = vmatmul.bf16.gmra.mxu0 %v1556
        %v1619 = vpop.f32.mrf.mxu0
        %v1620 = vadd.f32 0.0, %v1619
        %v1621 = vpop.f32.mrf.mxu0
        %1622 = vdwg.mxu0
        %1623 = vmatpush.bf16.msra.mxu0 0
        %1624 = vmatpush.bf16.msra.mxu0 %v1303
        %1625 = vmatpush.bf16.msra.mxu0 %v1271
        %1626 = vmatpush.bf16.msra.mxu0 %v1239
        %1627 = vmatpush.bf16.msra.mxu0 %v1207
        %1628 = vmatpush.bf16.msra.mxu0 %v1175
        %1629 = vmatpush.bf16.msra.mxu0 %v1143
        %1630 = vmatpush.bf16.msra.mxu0 %v1111
        %1631 = vmatmul.bf16.gmra.mxu0 %v1556
        %v1632 = vpop.f32.mrf.mxu0
        %v1633 = vadd.f32 0.0, %v1632
        %v1634 = vpop.f32.mrf.mxu0
        %1635 = vdwg.mxu0
        %1636 = vmatpush.bf16.msra.mxu0 0
        %1637 = vmatpush.bf16.msra.mxu0 %v1304
        %1638 = vmatpush.bf16.msra.mxu0 %v1272
        %1639 = vmatpush.bf16.msra.mxu0 %v1240
        %1640 = vmatpush.bf16.msra.mxu0 %v1208
        %1641 = vmatpush.bf16.msra.mxu0 %v1176
        %1642 = vmatpush.bf16.msra.mxu0 %v1144
        %1643 = vmatpush.bf16.msra.mxu0 %v1112
        %1644 = vmatmul.bf16.gmra.mxu0 %v1556
        %v1645 = vpop.f32.mrf.mxu0
        %v1646 = vadd.f32 0.0, %v1645
        %v1647 = vpop.f32.mrf.mxu0
        %1648 = vdwg.mxu0
        %1649 = vmatpush.bf16.msra.mxu0 0
        %1650 = vmatpush.bf16.msra.mxu0 %v1305
        %1651 = vmatpush.bf16.msra.mxu0 %v1273
        %1652 = vmatpush.bf16.msra.mxu0 %v1241
        %1653 = vmatpush.bf16.msra.mxu0 %v1209
        %1654 = vmatpush.bf16.msra.mxu0 %v1177
        %1655 = vmatpush.bf16.msra.mxu0 %v1145
        %1656 = vmatpush.bf16.msra.mxu0 %v1113
        %1657 = vmatmul.bf16.gmra.mxu0 %v1556
        %v1658 = vpop.f32.mrf.mxu0
        %v1659 = vadd.f32 0.0, %v1658
        %v1660 = vpop.f32.mrf.mxu0
        %1661 = vdwg.mxu0
        %1662 = vmatpush.bf16.msra.mxu0 0
        %1663 = vmatpush.bf16.msra.mxu0 %v1306
        %1664 = vmatpush.bf16.msra.mxu0 %v1274
        %1665 = vmatpush.bf16.msra.mxu0 %v1242
        %1666 = vmatpush.bf16.msra.mxu0 %v1210
        %1667 = vmatpush.bf16.msra.mxu0 %v1178
        %1668 = vmatpush.bf16.msra.mxu0 %v1146
        %1669 = vmatpush.bf16.msra.mxu0 %v1114
        %1670 = vmatmul.bf16.gmra.mxu0 %v1556
        %v1671 = vpop.f32.mrf.mxu0
        %v1672 = vadd.f32 0.0, %v1671
        %v1673 = vpop.f32.mrf.mxu0
        %1674 = vdwg.mxu0
        %1675 = vmatpush.bf16.msra.mxu0 0
        %1676 = vmatpush.bf16.msra.mxu0 %v1307
        %1677 = vmatpush.bf16.msra.mxu0 %v1275
        %1678 = vmatpush.bf16.msra.mxu0 %v1243
        %1679 = vmatpush.bf16.msra.mxu0 %v1211
        %1680 = vmatpush.bf16.msra.mxu0 %v1179
        %1681 = vmatpush.bf16.msra.mxu0 %v1147
        %1682 = vmatpush.bf16.msra.mxu0 %v1115
        %1683 = vmatmul.bf16.gmra.mxu0 %v1556
        %v1684 = vpop.f32.mrf.mxu0
        %v1685 = vadd.f32 0.0, %v1684
        %v1686 = vpop.f32.mrf.mxu0
        %1687 = vdwg.mxu0
        %1688 = vmatpush.bf16.msra.mxu0 0
        %1689 = vmatpush.bf16.msra.mxu0 %v1308
        %1690 = vmatpush.bf16.msra.mxu0 %v1276
        %1691 = vmatpush.bf16.msra.mxu0 %v1244
        %1692 = vmatpush.bf16.msra.mxu0 %v1212
        %1693 = vmatpush.bf16.msra.mxu0 %v1180
        %1694 = vmatpush.bf16.msra.mxu0 %v1148
        %1695 = vmatpush.bf16.msra.mxu0 %v1116
        %1696 = vmatmul.bf16.gmra.mxu0 %v1556
        %v1697 = vpop.f32.mrf.mxu0
        %v1698 = vadd.f32 0.0, %v1697
        %v1699 = vpop.f32.mrf.mxu0
        %1700 = vdwg.mxu0
        %1701 = vmatpush.bf16.msra.mxu0 0
        %1702 = vmatpush.bf16.msra.mxu0 %v1309
        %1703 = vmatpush.bf16.msra.mxu0 %v1277
        %1704 = vmatpush.bf16.msra.mxu0 %v1245
        %1705 = vmatpush.bf16.msra.mxu0 %v1213
        %1706 = vmatpush.bf16.msra.mxu0 %v1181
        %1707 = vmatpush.bf16.msra.mxu0 %v1149
        %1708 = vmatpush.bf16.msra.mxu0 %v1117
        %1709 = vmatmul.bf16.gmra.mxu0 %v1556
        %v1710 = vpop.f32.mrf.mxu0
        %v1711 = vadd.f32 0.0, %v1710
        %v1712 = vpop.f32.mrf.mxu0
        %1713 = vdwg.mxu0
        %1714 = vmatpush.bf16.msra.mxu0 0
        %1715 = vmatpush.bf16.msra.mxu0 %v1310
        %1716 = vmatpush.bf16.msra.mxu0 %v1278
        %1717 = vmatpush.bf16.msra.mxu0 %v1246
        %1718 = vmatpush.bf16.msra.mxu0 %v1214
        %1719 = vmatpush.bf16.msra.mxu0 %v1182
        %1720 = vmatpush.bf16.msra.mxu0 %v1150
        %1721 = vmatpush.bf16.msra.mxu0 %v1118
        %1722 = vmatmul.bf16.gmra.mxu0 %v1556
        %v1723 = vpop.f32.mrf.mxu0
        %v1724 = vadd.f32 0.0, %v1723
        %v1725 = vpop.f32.mrf.mxu0
        %1726 = vdwg.mxu0
        %1727 = vmatpush.bf16.msra.mxu0 0
        %1728 = vmatpush.bf16.msra.mxu0 %v1311
        %1729 = vmatpush.bf16.msra.mxu0 %v1279
        %1730 = vmatpush.bf16.msra.mxu0 %v1247
        %1731 = vmatpush.bf16.msra.mxu0 %v1215
        %1732 = vmatpush.bf16.msra.mxu0 %v1183
        %1733 = vmatpush.bf16.msra.mxu0 %v1151
        %1734 = vmatpush.bf16.msra.mxu0 %v1119
        %1735 = vmatmul.bf16.gmra.mxu0 %v1556
        %v1736 = vpop.f32.mrf.mxu0
        %v1737 = vadd.f32 0.0, %v1736
        %v1738 = vpop.f32.mrf.mxu0
        %1739 = vdwg.mxu0
        %1740 = vmatpush.bf16.msra.mxu0 0
        %1741 = vmatpush.bf16.msra.mxu0 %v1312
        %1742 = vmatpush.bf16.msra.mxu0 %v1280
        %1743 = vmatpush.bf16.msra.mxu0 %v1248
        %1744 = vmatpush.bf16.msra.mxu0 %v1216
        %1745 = vmatpush.bf16.msra.mxu0 %v1184
        %1746 = vmatpush.bf16.msra.mxu0 %v1152
        %1747 = vmatpush.bf16.msra.mxu0 %v1120
        %1748 = vmatmul.bf16.gmra.mxu0 %v1556
        %v1749 = vpop.f32.mrf.mxu0
        %v1750 = vadd.f32 0.0, %v1749
        %v1751 = vpop.f32.mrf.mxu0
        %1752 = vdwg.mxu0
        %1753 = vmatpush.bf16.msra.mxu0 0
        %1754 = vmatpush.bf16.msra.mxu0 %v1313
        %1755 = vmatpush.bf16.msra.mxu0 %v1281
        %1756 = vmatpush.bf16.msra.mxu0 %v1249
        %1757 = vmatpush.bf16.msra.mxu0 %v1217
        %1758 = vmatpush.bf16.msra.mxu0 %v1185
        %1759 = vmatpush.bf16.msra.mxu0 %v1153
        %1760 = vmatpush.bf16.msra.mxu0 %v1121
        %1761 = vmatmul.bf16.gmra.mxu0 %v1556
        %v1762 = vpop.f32.mrf.mxu0
        %v1763 = vadd.f32 0.0, %v1762
        %v1764 = vpop.f32.mrf.mxu0
        %1765 = vdwg.mxu0
        %1766 = vmatpush.bf16.msra.mxu0 0
        %1767 = vmatpush.bf16.msra.mxu0 %v1314
        %1768 = vmatpush.bf16.msra.mxu0 %v1282
        %1769 = vmatpush.bf16.msra.mxu0 %v1250
        %1770 = vmatpush.bf16.msra.mxu0 %v1218
        %1771 = vmatpush.bf16.msra.mxu0 %v1186
        %1772 = vmatpush.bf16.msra.mxu0 %v1154
        %1773 = vmatpush.bf16.msra.mxu0 %v1122
        %1774 = vmatmul.bf16.gmra.mxu0 %v1556
        %v1775 = vpop.f32.mrf.mxu0
        %v1776 = vadd.f32 0.0, %v1775
        %v1777 = vpop.f32.mrf.mxu0
        %1778 = vdwg.mxu0
        %1779 = vmatpush.bf16.msra.mxu0 0
        %1780 = vmatpush.bf16.msra.mxu0 %v1315
        %1781 = vmatpush.bf16.msra.mxu0 %v1283
        %1782 = vmatpush.bf16.msra.mxu0 %v1251
        %1783 = vmatpush.bf16.msra.mxu0 %v1219
        %1784 = vmatpush.bf16.msra.mxu0 %v1187
        %1785 = vmatpush.bf16.msra.mxu0 %v1155
        %1786 = vmatpush.bf16.msra.mxu0 %v1123
        %1787 = vmatmul.bf16.gmra.mxu0 %v1556
        %v1788 = vpop.f32.mrf.mxu0
        %v1789 = vadd.f32 0.0, %v1788
        %v1790 = vpop.f32.mrf.mxu0
        %1791 = vdwg.mxu0
        %1792 = vmatpush.bf16.msra.mxu0 0
        %1793 = vmatpush.bf16.msra.mxu0 %v1316
        %1794 = vmatpush.bf16.msra.mxu0 %v1284
        %1795 = vmatpush.bf16.msra.mxu0 %v1252
        %1796 = vmatpush.bf16.msra.mxu0 %v1220
        %1797 = vmatpush.bf16.msra.mxu0 %v1188
        %1798 = vmatpush.bf16.msra.mxu0 %v1156
        %1799 = vmatpush.bf16.msra.mxu0 %v1124
        %1800 = vmatmul.bf16.gmra.mxu0 %v1556
        %v1801 = vpop.f32.mrf.mxu0
        %v1802 = vadd.f32 0.0, %v1801
        %v1803 = vpop.f32.mrf.mxu0
        %1804 = vdwg.mxu0
        %1805 = vmatpush.bf16.msra.mxu0 0
        %1806 = vmatpush.bf16.msra.mxu0 %v1317
        %1807 = vmatpush.bf16.msra.mxu0 %v1285
        %1808 = vmatpush.bf16.msra.mxu0 %v1253
        %1809 = vmatpush.bf16.msra.mxu0 %v1221
        %1810 = vmatpush.bf16.msra.mxu0 %v1189
        %1811 = vmatpush.bf16.msra.mxu0 %v1157
        %1812 = vmatpush.bf16.msra.mxu0 %v1125
        %1813 = vmatmul.bf16.gmra.mxu0 %v1556
        %v1814 = vpop.f32.mrf.mxu0
        %v1815 = vadd.f32 0.0, %v1814
        %v1816 = vpop.f32.mrf.mxu0
        %1817 = vdwg.mxu0
        %1818 = vmatpush.bf16.msra.mxu0 0
        %1819 = vmatpush.bf16.msra.mxu0 %v1318
        %1820 = vmatpush.bf16.msra.mxu0 %v1286
        %1821 = vmatpush.bf16.msra.mxu0 %v1254
        %1822 = vmatpush.bf16.msra.mxu0 %v1222
        %1823 = vmatpush.bf16.msra.mxu0 %v1190
        %1824 = vmatpush.bf16.msra.mxu0 %v1158
        %1825 = vmatpush.bf16.msra.mxu0 %v1126
        %1826 = vmatmul.bf16.gmra.mxu0 %v1556
        %v1827 = vpop.f32.mrf.mxu0
        %v1828 = vadd.f32 0.0, %v1827
        %v1829 = vpop.f32.mrf.mxu0
        %1830 = vdwg.mxu0
        %1831 = vmatpush.bf16.msra.mxu0 0
        %1832 = vmatpush.bf16.msra.mxu0 %v1319
        %1833 = vmatpush.bf16.msra.mxu0 %v1287
        %1834 = vmatpush.bf16.msra.mxu0 %v1255
        %1835 = vmatpush.bf16.msra.mxu0 %v1223
        %1836 = vmatpush.bf16.msra.mxu0 %v1191
        %1837 = vmatpush.bf16.msra.mxu0 %v1159
        %1838 = vmatpush.bf16.msra.mxu0 %v1127
        %1839 = vmatmul.bf16.gmra.mxu0 %v1556
        %v1840 = vpop.f32.mrf.mxu0
        %v1841 = vadd.f32 0.0, %v1840
        %v1842 = vpop.f32.mrf.mxu0
        %1843 = vdwg.mxu0
        %1844 = vmatpush.bf16.msra.mxu0 0
        %1845 = vmatpush.bf16.msra.mxu0 %v1320
        %1846 = vmatpush.bf16.msra.mxu0 %v1288
        %1847 = vmatpush.bf16.msra.mxu0 %v1256
        %1848 = vmatpush.bf16.msra.mxu0 %v1224
        %1849 = vmatpush.bf16.msra.mxu0 %v1192
        %1850 = vmatpush.bf16.msra.mxu0 %v1160
        %1851 = vmatpush.bf16.msra.mxu0 %v1128
        %1852 = vmatmul.bf16.gmra.mxu0 %v1556
        %v1853 = vpop.f32.mrf.mxu0
        %v1854 = vadd.f32 0.0, %v1853
        %v1855 = vpop.f32.mrf.mxu0
        %1856 = vdwg.mxu0
        %1857 = vmatpush.bf16.msra.mxu0 0
        %1858 = vmatpush.bf16.msra.mxu0 %v1321
        %1859 = vmatpush.bf16.msra.mxu0 %v1289
        %1860 = vmatpush.bf16.msra.mxu0 %v1257
        %1861 = vmatpush.bf16.msra.mxu0 %v1225
        %1862 = vmatpush.bf16.msra.mxu0 %v1193
        %1863 = vmatpush.bf16.msra.mxu0 %v1161
        %1864 = vmatpush.bf16.msra.mxu0 %v1129
        %1865 = vmatmul.bf16.gmra.mxu0 %v1556
        %v1866 = vpop.f32.mrf.mxu0
        %v1867 = vadd.f32 0.0, %v1866
        %v1868 = vpop.f32.mrf.mxu0
        %1869 = vdwg.mxu0
        %1870 = vmatpush.bf16.msra.mxu0 0
        %1871 = vmatpush.bf16.msra.mxu0 %v1322
        %1872 = vmatpush.bf16.msra.mxu0 %v1290
        %1873 = vmatpush.bf16.msra.mxu0 %v1258
        %1874 = vmatpush.bf16.msra.mxu0 %v1226
        %1875 = vmatpush.bf16.msra.mxu0 %v1194
        %1876 = vmatpush.bf16.msra.mxu0 %v1162
        %1877 = vmatpush.bf16.msra.mxu0 %v1130
        %1878 = vmatmul.bf16.gmra.mxu0 %v1556
        %v1879 = vpop.f32.mrf.mxu0
        %v1880 = vadd.f32 0.0, %v1879
        %v1881 = vpop.f32.mrf.mxu0
        %1882 = vdwg.mxu0
        %1883 = vmatpush.bf16.msra.mxu0 0
        %1884 = vmatpush.bf16.msra.mxu0 %v1323
        %1885 = vmatpush.bf16.msra.mxu0 %v1291
        %1886 = vmatpush.bf16.msra.mxu0 %v1259
        %1887 = vmatpush.bf16.msra.mxu0 %v1227
        %1888 = vmatpush.bf16.msra.mxu0 %v1195
        %1889 = vmatpush.bf16.msra.mxu0 %v1163
        %1890 = vmatpush.bf16.msra.mxu0 %v1131
        %1891 = vmatmul.bf16.gmra.mxu0 %v1556
        %v1892 = vpop.f32.mrf.mxu0
        %v1893 = vadd.f32 0.0, %v1892
        %v1894 = vpop.f32.mrf.mxu0
        %1895 = vdwg.mxu0
        %1896 = vmatpush.bf16.msra.mxu0 0
        %1897 = vmatpush.bf16.msra.mxu0 %v1324
        %1898 = vmatpush.bf16.msra.mxu0 %v1292
        %1899 = vmatpush.bf16.msra.mxu0 %v1260
        %1900 = vmatpush.bf16.msra.mxu0 %v1228
        %1901 = vmatpush.bf16.msra.mxu0 %v1196
        %1902 = vmatpush.bf16.msra.mxu0 %v1164
        %1903 = vmatpush.bf16.msra.mxu0 %v1132
        %1904 = vmatmul.bf16.gmra.mxu0 %v1556
        %v1905 = vpop.f32.mrf.mxu0
        %v1906 = vadd.f32 0.0, %v1905
        %v1907 = vpop.f32.mrf.mxu0
        %1908 = vdwg.mxu0
        %1909 = vmatpush.bf16.msra.mxu0 0
        %1910 = vmatpush.bf16.msra.mxu0 %v1325
        %1911 = vmatpush.bf16.msra.mxu0 %v1293
        %1912 = vmatpush.bf16.msra.mxu0 %v1261
        %1913 = vmatpush.bf16.msra.mxu0 %v1229
        %1914 = vmatpush.bf16.msra.mxu0 %v1197
        %1915 = vmatpush.bf16.msra.mxu0 %v1165
        %1916 = vmatpush.bf16.msra.mxu0 %v1133
        %1917 = vmatmul.bf16.gmra.mxu0 %v1556
        %v1918 = vpop.f32.mrf.mxu0
        %v1919 = vadd.f32 0.0, %v1918
        %v1920 = vpop.f32.mrf.mxu0
        %1921 = vdwg.mxu0
        %1922 = vmatpush.bf16.msra.mxu0 0
        %1923 = vmatpush.bf16.msra.mxu0 %v1326
        %1924 = vmatpush.bf16.msra.mxu0 %v1294
        %1925 = vmatpush.bf16.msra.mxu0 %v1262
        %1926 = vmatpush.bf16.msra.mxu0 %v1230
        %1927 = vmatpush.bf16.msra.mxu0 %v1198
        %1928 = vmatpush.bf16.msra.mxu0 %v1166
        %1929 = vmatpush.bf16.msra.mxu0 %v1134
        %1930 = vmatmul.bf16.gmra.mxu0 %v1556
        %v1931 = vpop.f32.mrf.mxu0
        %v1932 = vadd.f32 0.0, %v1931
        %v1933 = vpop.f32.mrf.mxu0
        %1934 = vdwg.mxu0
        %1935 = vmatpush.bf16.msra.mxu0 0
        %1936 = vmatpush.bf16.msra.mxu0 %v1327
        %1937 = vmatpush.bf16.msra.mxu0 %v1295
        %1938 = vmatpush.bf16.msra.mxu0 %v1263
        %1939 = vmatpush.bf16.msra.mxu0 %v1231
        %1940 = vmatpush.bf16.msra.mxu0 %v1199
        %1941 = vmatpush.bf16.msra.mxu0 %v1167
        %1942 = vmatpush.bf16.msra.mxu0 %v1135
        %1943 = vmatmul.bf16.gmra.mxu0 %v1556
        %v1944 = vpop.f32.mrf.mxu0
        %v1945 = vadd.f32 0.0, %v1944
        %v1946 = vpop.f32.mrf.mxu0
        %1947 = vdwg.mxu0
        %1948 = vmatpush.bf16.msra.mxu0 0
        %1949 = vmatpush.bf16.msra.mxu0 %v1328
        %1950 = vmatpush.bf16.msra.mxu0 %v1296
        %1951 = vmatpush.bf16.msra.mxu0 %v1264
        %1952 = vmatpush.bf16.msra.mxu0 %v1232
        %1953 = vmatpush.bf16.msra.mxu0 %v1200
        %1954 = vmatpush.bf16.msra.mxu0 %v1168
        %1955 = vmatpush.bf16.msra.mxu0 %v1136
        %1956 = vmatmul.bf16.gmra.mxu0 %v1556
        %v1957 = vpop.f32.mrf.mxu0
        %v1958 = vadd.f32 0.0, %v1957
        %v1959 = vpop.f32.mrf.mxu0
        %1960 = vdwg.mxu0
        %1961 = vmatpush.bf16.msra.mxu0 0
        %1962 = vmatpush.bf16.msra.mxu0 %v1329
        %1963 = vmatpush.bf16.msra.mxu0 %v1297
        %1964 = vmatpush.bf16.msra.mxu0 %v1265
        %1965 = vmatpush.bf16.msra.mxu0 %v1233
        %1966 = vmatpush.bf16.msra.mxu0 %v1201
        %1967 = vmatpush.bf16.msra.mxu0 %v1169
        %1968 = vmatpush.bf16.msra.mxu0 %v1137
        %1969 = vmatmul.bf16.gmra.mxu0 %v1556
        %v1970 = vpop.f32.mrf.mxu0
        %v1971 = vadd.f32 0.0, %v1970
        %v1972 = vpop.f32.mrf.mxu0
        %1973 = vdwg.mxu0
        %vm1974 = vcmask 1043456
        %v1975 = vsel %vm1974, %v1568, 0.0
        %v1976 = vsel %vm1974, %v1581, 0.0
        %v1977 = vadd.f32 %v1975, %v1976
        %v1978 = vsel %vm1974, %v1594, 0.0
        %v1979 = vadd.f32 %v1977, %v1978
        %v1980 = vsel %vm1974, %v1607, 0.0
        %v1981 = vadd.f32 %v1979, %v1980
        %v1982 = vsel %vm1974, %v1620, 0.0
        %v1983 = vadd.f32 %v1981, %v1982
        %v1984 = vsel %vm1974, %v1633, 0.0
        %v1985 = vadd.f32 %v1983, %v1984
        %v1986 = vsel %vm1974, %v1646, 0.0
        %v1987 = vadd.f32 %v1985, %v1986
        %v1988 = vsel %vm1974, %v1659, 0.0
        %v1989 = vadd.f32 %v1987, %v1988
        %v1990 = vsel %vm1974, %v1672, 0.0
        %v1991 = vadd.f32 %v1989, %v1990
        %v1992 = vsel %vm1974, %v1685, 0.0
        %v1993 = vadd.f32 %v1991, %v1992
        %v1994 = vsel %vm1974, %v1698, 0.0
        %v1995 = vadd.f32 %v1993, %v1994
        %v1996 = vsel %vm1974, %v1711, 0.0
        %v1997 = vadd.f32 %v1995, %v1996
        %v1998 = vsel %vm1974, %v1724, 0.0
        %v1999 = vadd.f32 %v1997, %v1998
        %v2000 = vsel %vm1974, %v1737, 0.0
        %v2001 = vadd.f32 %v1999, %v2000
        %v2002 = vsel %vm1974, %v1750, 0.0
        %v2003 = vadd.f32 %v2001, %v2002
        %v2004 = vsel %vm1974, %v1763, 0.0
        %v2005 = vadd.f32 %v2003, %v2004
        %v2006 = vsel %vm1974, %v1776, 0.0
        %v2007 = vadd.f32 %v2005, %v2006
        %v2008 = vsel %vm1974, %v1789, 0.0
        %v2009 = vadd.f32 %v2007, %v2008
        %v2010 = vsel %vm1974, %v1802, 0.0
        %v2011 = vadd.f32 %v2009, %v2010
        %v2012 = vsel %vm1974, %v1815, 0.0
        %v2013 = vadd.f32 %v2011, %v2012
        %v2014 = vsel %vm1974, %v1828, 0.0
        %v2015 = vadd.f32 %v2013, %v2014
        %v2016 = vsel %vm1974, %v1841, 0.0
        %v2017 = vadd.f32 %v2015, %v2016
        %v2018 = vsel %vm1974, %v1854, 0.0
        %v2019 = vadd.f32 %v2017, %v2018
        %v2020 = vsel %vm1974, %v1867, 0.0
        %v2021 = vadd.f32 %v2019, %v2020
        %v2022 = vsel %vm1974, %v1880, 0.0
        %v2023 = vadd.f32 %v2021, %v2022
        %v2024 = vsel %vm1974, %v1893, 0.0
        %v2025 = vadd.f32 %v2023, %v2024
        %v2026 = vsel %vm1974, %v1906, 0.0
        %v2027 = vadd.f32 %v2025, %v2026
        %v2028 = vsel %vm1974, %v1919, 0.0
        %v2029 = vadd.f32 %v2027, %v2028
        %v2030 = vsel %vm1974, %v1932, 0.0
        %v2031 = vadd.f32 %v2029, %v2030
        %v2032 = vsel %vm1974, %v1945, 0.0
        %v2033 = vadd.f32 %v2031, %v2032
        %v2034 = vsel %vm1974, %v1958, 0.0
        %v2035 = vadd.f32 %v2033, %v2034
        %v2036 = vsel %vm1974, %v1971, 0.0
        %v2037 = vadd.f32 %v2035, %v2036
        %2038 = vadd.xlane.f32.xlu0 %v2037
        %v2039 = vpop.xlane.xlu0 %2038
        %v2040 = vrcp.pop 4096.0
        %v2041 = vmul.f32 4096.0, %v2040
        %v2042 = vsub.f32 1.0, %v2041
        %v2043 = vmul.f32 %v2040, %v2042
        %v2044 = vadd.f32 %v2040, %v2043
        %vm2045 = vweird.f32 %v2040
        %v2046 = vsel %vm2045, %v2040, %v2044
        %v2047 = vmul.f32 %v2039, %v2046
        %v2048 = vsub.f32 %v1568, %v2047
        %v2049 = vsub.f32 %v1581, %v2047
        %v2050 = vsub.f32 %v1594, %v2047
        %v2051 = vsub.f32 %v1607, %v2047
        %v2052 = vsub.f32 %v1620, %v2047
        %v2053 = vsub.f32 %v1633, %v2047
        %v2054 = vsub.f32 %v1646, %v2047
        %v2055 = vsub.f32 %v1659, %v2047
        %v2056 = vsub.f32 %v1672, %v2047
        %v2057 = vsub.f32 %v1685, %v2047
        %v2058 = vsub.f32 %v1698, %v2047
        %v2059 = vsub.f32 %v1711, %v2047
        %v2060 = vsub.f32 %v1724, %v2047
        %v2061 = vsub.f32 %v1737, %v2047
        %v2062 = vsub.f32 %v1750, %v2047
        %v2063 = vsub.f32 %v1763, %v2047
        %v2064 = vsub.f32 %v1776, %v2047
        %v2065 = vsub.f32 %v1789, %v2047
        %v2066 = vsub.f32 %v1802, %v2047
        %v2067 = vsub.f32 %v1815, %v2047
        %v2068 = vsub.f32 %v1828, %v2047
        %v2069 = vsub.f32 %v1841, %v2047
        %v2070 = vsub.f32 %v1854, %v2047
        %v2071 = vsub.f32 %v1867, %v2047
        %v2072 = vsub.f32 %v1880, %v2047
        %v2073 = vsub.f32 %v1893, %v2047
        %v2074 = vsub.f32 %v1906, %v2047
        %v2075 = vsub.f32 %v1919, %v2047
        %v2076 = vsub.f32 %v1932, %v2047
        %v2077 = vsub.f32 %v1945, %v2047
        %v2078 = vsub.f32 %v1958, %v2047
        %v2079 = vsub.f32 %v1971, %v2047
        %v2080 = vmul.f32 %v2048, %v2048
        %v2081 = vmul.f32 %v2049, %v2049
        %v2082 = vmul.f32 %v2050, %v2050
        %v2083 = vmul.f32 %v2051, %v2051
        %v2084 = vmul.f32 %v2052, %v2052
        %v2085 = vmul.f32 %v2053, %v2053
        %v2086 = vmul.f32 %v2054, %v2054
        %v2087 = vmul.f32 %v2055, %v2055
        %v2088 = vmul.f32 %v2056, %v2056
        %v2089 = vmul.f32 %v2057, %v2057
        %v2090 = vmul.f32 %v2058, %v2058
        %v2091 = vmul.f32 %v2059, %v2059
        %v2092 = vmul.f32 %v2060, %v2060
        %v2093 = vmul.f32 %v2061, %v2061
        %v2094 = vmul.f32 %v2062, %v2062
        %v2095 = vmul.f32 %v2063, %v2063
        %v2096 = vmul.f32 %v2064, %v2064
        %v2097 = vmul.f32 %v2065, %v2065
        %v2098 = vmul.f32 %v2066, %v2066
        %v2099 = vmul.f32 %v2067, %v2067
        %v2100 = vmul.f32 %v2068, %v2068
        %v2101 = vmul.f32 %v2069, %v2069
        %v2102 = vmul.f32 %v2070, %v2070
        %v2103 = vmul.f32 %v2071, %v2071
        %v2104 = vmul.f32 %v2072, %v2072
        %v2105 = vmul.f32 %v2073, %v2073
        %v2106 = vmul.f32 %v2074, %v2074
        %v2107 = vmul.f32 %v2075, %v2075
        %v2108 = vmul.f32 %v2076, %v2076
        %v2109 = vmul.f32 %v2077, %v2077
        %v2110 = vmul.f32 %v2078, %v2078
        %v2111 = vmul.f32 %v2079, %v2079
        %v2112 = vsel %vm1974, %v2080, 0.0
        %v2113 = vsel %vm1974, %v2081, 0.0
        %v2114 = vadd.f32 %v2112, %v2113
        %v2115 = vsel %vm1974, %v2082, 0.0
        %v2116 = vadd.f32 %v2114, %v2115
        %v2117 = vsel %vm1974, %v2083, 0.0
        %v2118 = vadd.f32 %v2116, %v2117
        %v2119 = vsel %vm1974, %v2084, 0.0
        %v2120 = vadd.f32 %v2118, %v2119
        %v2121 = vsel %vm1974, %v2085, 0.0
        %v2122 = vadd.f32 %v2120, %v2121
        %v2123 = vsel %vm1974, %v2086, 0.0
        %v2124 = vadd.f32 %v2122, %v2123
        %v2125 = vsel %vm1974, %v2087, 0.0
        %v2126 = vadd.f32 %v2124, %v2125
        %v2127 = vsel %vm1974, %v2088, 0.0
        %v2128 = vadd.f32 %v2126, %v2127
        %v2129 = vsel %vm1974, %v2089, 0.0
        %v2130 = vadd.f32 %v2128, %v2129
        %v2131 = vsel %vm1974, %v2090, 0.0
        %v2132 = vadd.f32 %v2130, %v2131
        %v2133 = vsel %vm1974, %v2091, 0.0
        %v2134 = vadd.f32 %v2132, %v2133
        %v2135 = vsel %vm1974, %v2092, 0.0
        %v2136 = vadd.f32 %v2134, %v2135
        %v2137 = vsel %vm1974, %v2093, 0.0
        %v2138 = vadd.f32 %v2136, %v2137
        %v2139 = vsel %vm1974, %v2094, 0.0
        %v2140 = vadd.f32 %v2138, %v2139
        %v2141 = vsel %vm1974, %v2095, 0.0
        %v2142 = vadd.f32 %v2140, %v2141
        %v2143 = vsel %vm1974, %v2096, 0.0
        %v2144 = vadd.f32 %v2142, %v2143
        %v2145 = vsel %vm1974, %v2097, 0.0
        %v2146 = vadd.f32 %v2144, %v2145
        %v2147 = vsel %vm1974, %v2098, 0.0
        %v2148 = vadd.f32 %v2146, %v2147
        %v2149 = vsel %vm1974, %v2099, 0.0
        %v2150 = vadd.f32 %v2148, %v2149
        %v2151 = vsel %vm1974, %v2100, 0.0
        %v2152 = vadd.f32 %v2150, %v2151
        %v2153 = vsel %vm1974, %v2101, 0.0
        %v2154 = vadd.f32 %v2152, %v2153
        %v2155 = vsel %vm1974, %v2102, 0.0
        %v2156 = vadd.f32 %v2154, %v2155
        %v2157 = vsel %vm1974, %v2103, 0.0
        %v2158 = vadd.f32 %v2156, %v2157
        %v2159 = vsel %vm1974, %v2104, 0.0
        %v2160 = vadd.f32 %v2158, %v2159
        %v2161 = vsel %vm1974, %v2105, 0.0
        %v2162 = vadd.f32 %v2160, %v2161
        %v2163 = vsel %vm1974, %v2106, 0.0
        %v2164 = vadd.f32 %v2162, %v2163
        %v2165 = vsel %vm1974, %v2107, 0.0
        %v2166 = vadd.f32 %v2164, %v2165
        %v2167 = vsel %vm1974, %v2108, 0.0
        %v2168 = vadd.f32 %v2166, %v2167
        %v2169 = vsel %vm1974, %v2109, 0.0
        %v2170 = vadd.f32 %v2168, %v2169
        %v2171 = vsel %vm1974, %v2110, 0.0
        %v2172 = vadd.f32 %v2170, %v2171
        %v2173 = vsel %vm1974, %v2111, 0.0
        %v2174 = vadd.f32 %v2172, %v2173
        %2175 = vadd.xlane.f32.xlu0 %v2174
        %v2176 = vpop.xlane.xlu0 %2175
        %v2177 = vmul.f32 %v2176, %v2046
        %v2178 = vadd.f32 %v2177, 1e-05
        %v2179 = vrsqrt.pop %v2178
        %v2180 = vmul.f32 %v2179, %v2178
        %v2181 = vmul.f32 %v2180, %v2179
        %v2182 = vmul.f32 0.5, %v2181
        %v2183 = vsub.f32 1.5, %v2182
        %v2184 = vmul.f32 %v2179, %v2183
        %vm2185 = vweird.f32 %v2178
        %vm2186 = vweird.f32 %v2179
        %vm2187 = vmor %vm2185, %vm2186
        %v2188 = vsel %vm2187, %v2179, %v2184
        %v2189 = vmul.f32 %v2048, %v2188
        %v2190 = vmul.f32 %v2049, %v2188
        %v2191 = vmul.f32 %v2050, %v2188
        %v2192 = vmul.f32 %v2051, %v2188
        %v2193 = vmul.f32 %v2052, %v2188
        %v2194 = vmul.f32 %v2053, %v2188
        %v2195 = vmul.f32 %v2054, %v2188
        %v2196 = vmul.f32 %v2055, %v2188
        %v2197 = vmul.f32 %v2056, %v2188
        %v2198 = vmul.f32 %v2057, %v2188
        %v2199 = vmul.f32 %v2058, %v2188
        %v2200 = vmul.f32 %v2059, %v2188
        %v2201 = vmul.f32 %v2060, %v2188
        %v2202 = vmul.f32 %v2061, %v2188
        %v2203 = vmul.f32 %v2062, %v2188
        %v2204 = vmul.f32 %v2063, %v2188
        %v2205 = vmul.f32 %v2064, %v2188
        %v2206 = vmul.f32 %v2065, %v2188
        %v2207 = vmul.f32 %v2066, %v2188
        %v2208 = vmul.f32 %v2067, %v2188
        %v2209 = vmul.f32 %v2068, %v2188
        %v2210 = vmul.f32 %v2069, %v2188
        %v2211 = vmul.f32 %v2070, %v2188
        %v2212 = vmul.f32 %v2071, %v2188
        %v2213 = vmul.f32 %v2072, %v2188
        %v2214 = vmul.f32 %v2073, %v2188
        %v2215 = vmul.f32 %v2074, %v2188
        %v2216 = vmul.f32 %v2075, %v2188
        %v2217 = vmul.f32 %v2076, %v2188
        %v2218 = vmul.f32 %v2077, %v2188
        %v2219 = vmul.f32 %v2078, %v2188
        %v2220 = vmul.f32 %v2079, %v2188
        %vm2221 = vcmp.gt.f32.partialorder %v2189, 0.0
        %vm2222 = vcmp.gt.f32.partialorder %v2190, 0.0
        %vm2223 = vcmp.gt.f32.partialorder %v2191, 0.0
        %vm2224 = vcmp.gt.f32.partialorder %v2192, 0.0
        %vm2225 = vcmp.gt.f32.partialorder %v2193, 0.0
        %vm2226 = vcmp.gt.f32.partialorder %v2194, 0.0
        %vm2227 = vcmp.gt.f32.partialorder %v2195, 0.0
        %vm2228 = vcmp.gt.f32.partialorder %v2196, 0.0
        %vm2229 = vcmp.gt.f32.partialorder %v2197, 0.0
        %vm2230 = vcmp.gt.f32.partialorder %v2198, 0.0
        %vm2231 = vcmp.gt.f32.partialorder %v2199, 0.0
        %vm2232 = vcmp.gt.f32.partialorder %v2200, 0.0
        %vm2233 = vcmp.gt.f32.partialorder %v2201, 0.0
        %vm2234 = vcmp.gt.f32.partialorder %v2202, 0.0
        %vm2235 = vcmp.gt.f32.partialorder %v2203, 0.0
        %vm2236 = vcmp.gt.f32.partialorder %v2204, 0.0
        %vm2237 = vcmp.gt.f32.partialorder %v2205, 0.0
        %vm2238 = vcmp.gt.f32.partialorder %v2206, 0.0
        %vm2239 = vcmp.gt.f32.partialorder %v2207, 0.0
        %vm2240 = vcmp.gt.f32.partialorder %v2208, 0.0
        %vm2241 = vcmp.gt.f32.partialorder %v2209, 0.0
        %vm2242 = vcmp.gt.f32.partialorder %v2210, 0.0
        %vm2243 = vcmp.gt.f32.partialorder %v2211, 0.0
        %vm2244 = vcmp.gt.f32.partialorder %v2212, 0.0
        %vm2245 = vcmp.gt.f32.partialorder %v2213, 0.0
        %vm2246 = vcmp.gt.f32.partialorder %v2214, 0.0
        %vm2247 = vcmp.gt.f32.partialorder %v2215, 0.0
        %vm2248 = vcmp.gt.f32.partialorder %v2216, 0.0
        %vm2249 = vcmp.gt.f32.partialorder %v2217, 0.0
        %vm2250 = vcmp.gt.f32.partialorder %v2218, 0.0
        %vm2251 = vcmp.gt.f32.partialorder %v2219, 0.0
        %vm2252 = vcmp.gt.f32.partialorder %v2220, 0.0
        %v2253 = vld [vmem:[#allocation2] sm:$0x1]
        %v2255 = vperm.slane %v2253, 0
        %2256 = vset.pattern.permute.xlu0 0
        %2257 = vperm.xlu0 %2256, %v2255
        %v2258 = vpop.permute.xlu0 %2257
        %v2260 = vmul.f32 %v2258, %v2189
        %v2261 = vmul.f32 %v2258, %v2190
        %v2262 = vmul.f32 %v2258, %v2191
        %v2263 = vmul.f32 %v2258, %v2192
        %v2264 = vmul.f32 %v2258, %v2193
        %v2265 = vmul.f32 %v2258, %v2194
        %v2266 = vmul.f32 %v2258, %v2195
        %v2267 = vmul.f32 %v2258, %v2196
        %v2268 = vmul.f32 %v2258, %v2197
        %v2269 = vmul.f32 %v2258, %v2198
        %v2270 = vmul.f32 %v2258, %v2199
        %v2271 = vmul.f32 %v2258, %v2200
        %v2272 = vmul.f32 %v2258, %v2201
        %v2273 = vmul.f32 %v2258, %v2202
        %v2274 = vmul.f32 %v2258, %v2203
        %v2275 = vmul.f32 %v2258, %v2204
        %v2276 = vmul.f32 %v2258, %v2205
        %v2277 = vmul.f32 %v2258, %v2206
        %v2278 = vmul.f32 %v2258, %v2207
        %v2279 = vmul.f32 %v2258, %v2208
        %v2280 = vmul.f32 %v2258, %v2209
        %v2281 = vmul.f32 %v2258, %v2210
        %v2282 = vmul.f32 %v2258, %v2211
        %v2283 = vmul.f32 %v2258, %v2212
        %v2284 = vmul.f32 %v2258, %v2213
        %v2285 = vmul.f32 %v2258, %v2214
        %v2286 = vmul.f32 %v2258, %v2215
        %v2287 = vmul.f32 %v2258, %v2216
        %v2288 = vmul.f32 %v2258, %v2217
        %v2289 = vmul.f32 %v2258, %v2218
        %v2290 = vmul.f32 %v2258, %v2219
        %v2291 = vmul.f32 %v2258, %v2220
        %v2292 = vsel %vm2221, %v2189, %v2260
        %v2293 = vsel %vm2222, %v2190, %v2261
        %v2294 = vsel %vm2223, %v2191, %v2262
        %v2295 = vsel %vm2224, %v2192, %v2263
        %v2296 = vsel %vm2225, %v2193, %v2264
        %v2297 = vsel %vm2226, %v2194, %v2265
        %v2298 = vsel %vm2227, %v2195, %v2266
        %v2299 = vsel %vm2228, %v2196, %v2267
        %v2300 = vsel %vm2229, %v2197, %v2268
        %v2301 = vsel %vm2230, %v2198, %v2269
        %v2302 = vsel %vm2231, %v2199, %v2270
        %v2303 = vsel %vm2232, %v2200, %v2271
        %v2304 = vsel %vm2233, %v2201, %v2272
        %v2305 = vsel %vm2234, %v2202, %v2273
        %v2306 = vsel %vm2235, %v2203, %v2274
        %v2307 = vsel %vm2236, %v2204, %v2275
        %v2308 = vsel %vm2237, %v2205, %v2276
        %v2309 = vsel %vm2238, %v2206, %v2277
        %v2310 = vsel %vm2239, %v2207, %v2278
        %v2311 = vsel %vm2240, %v2208, %v2279
        %v2312 = vsel %vm2241, %v2209, %v2280
        %v2313 = vsel %vm2242, %v2210, %v2281
        %v2314 = vsel %vm2243, %v2211, %v2282
        %v2315 = vsel %vm2244, %v2212, %v2283
        %v2316 = vsel %vm2245, %v2213, %v2284
        %v2317 = vsel %vm2246, %v2214, %v2285
        %v2318 = vsel %vm2247, %v2215, %v2286
        %v2319 = vsel %vm2248, %v2216, %v2287
        %v2320 = vsel %vm2249, %v2217, %v2288
        %v2321 = vsel %vm2250, %v2218, %v2289
        %v2322 = vsel %vm2251, %v2219, %v2290
        %v2323 = vsel %vm2252, %v2220, %v2291
        %v2324 = vpack.c.bf16 %v2293, %v2292
        %v2325 = vpack.c.bf16 %v2295, %v2294
        %v2326 = vpack.c.bf16 %v2297, %v2296
        %v2327 = vpack.c.bf16 %v2299, %v2298
        %v2328 = vpack.c.bf16 %v2301, %v2300
        %v2329 = vpack.c.bf16 %v2303, %v2302
        %v2330 = vpack.c.bf16 %v2305, %v2304
        %v2331 = vpack.c.bf16 %v2307, %v2306
        %v2332 = vpack.c.bf16 %v2309, %v2308
        %v2333 = vpack.c.bf16 %v2311, %v2310
        %v2334 = vpack.c.bf16 %v2313, %v2312
        %v2335 = vpack.c.bf16 %v2315, %v2314
        %v2336 = vpack.c.bf16 %v2317, %v2316
        %v2337 = vpack.c.bf16 %v2319, %v2318
        %v2338 = vpack.c.bf16 %v2321, %v2320
        %v2339 = vpack.c.bf16 %v2323, %v2322
        %v2356 = vrot.slane %v2324, 2
        %v2357 = vrot.slane %v2325, 4
        %v2358 = vrot.slane %v2325, 6
        %v2359 = vrot.slane %v2326, 2
        %v2360 = vrot.slane %v2327, 4
        %v2361 = vrot.slane %v2327, 6
        %v2362 = vrot.slane %v2328, 2
        %v2363 = vrot.slane %v2329, 4
        %v2364 = vrot.slane %v2329, 6
        %v2365 = vrot.slane %v2330, 2
        %v2366 = vrot.slane %v2331, 4
        %v2367 = vrot.slane %v2331, 6
        %v2368 = vrot.slane %v2332, 2
        %v2369 = vrot.slane %v2333, 4
        %v2370 = vrot.slane %v2333, 6
        %v2371 = vrot.slane %v2334, 2
        %v2372 = vrot.slane %v2335, 4
        %v2373 = vrot.slane %v2335, 6
        %v2374 = vrot.slane %v2336, 2
        %v2375 = vrot.slane %v2337, 4
        %v2376 = vrot.slane %v2337, 6
        %v2377 = vrot.slane %v2338, 2
        %v2378 = vrot.slane %v2339, 4
        %v2379 = vrot.slane %v2339, 6
        %vm2380 = vcmask 1041408
        %v2383 = vsel %vm2380, %v2324, %v2356
        %vm2384 = vcmask 1045508
        %v2387 = vsel %vm2384, %v2357, %v2358
        %v2388 = vsel %vm1974, %v2383, %v2387
        %v2391 = vsel %vm2380, %v2326, %v2359
        %v2394 = vsel %vm2384, %v2360, %v2361
        %v2395 = vsel %vm1974, %v2391, %v2394
        %v2398 = vsel %vm2380, %v2328, %v2362
        %v2401 = vsel %vm2384, %v2363, %v2364
        %v2402 = vsel %vm1974, %v2398, %v2401
        %v2405 = vsel %vm2380, %v2330, %v2365
        %v2408 = vsel %vm2384, %v2366, %v2367
        %v2409 = vsel %vm1974, %v2405, %v2408
        %v2412 = vsel %vm2380, %v2332, %v2368
        %v2415 = vsel %vm2384, %v2369, %v2370
        %v2416 = vsel %vm1974, %v2412, %v2415
        %v2419 = vsel %vm2380, %v2334, %v2371
        %v2422 = vsel %vm2384, %v2372, %v2373
        %v2423 = vsel %vm1974, %v2419, %v2422
        %v2426 = vsel %vm2380, %v2336, %v2374
        %v2429 = vsel %vm2384, %v2375, %v2376
        %v2430 = vsel %vm1974, %v2426, %v2429
        %v2433 = vsel %vm2380, %v2338, %v2377
        %v2436 = vsel %vm2384, %v2378, %v2379
        %v2437 = vsel %vm1974, %v2433, %v2436
        %2446 = vst [vmem:[%s207] sm:$0xff] %v2388
        %2447 = vst [vmem:[%s207 + $0x8] sm:$0xff] %v2395
        %2448 = vst [vmem:[%s207 + $0x10] sm:$0xff] %v2402
        %2449 = vst [vmem:[%s207 + $0x18] sm:$0xff] %v2409
        %2450 = vst [vmem:[%s207 + $0x20] sm:$0xff] %v2416
        %2451 = vst [vmem:[%s207 + $0x28] sm:$0xff] %v2423
        %2452 = vst [vmem:[%s207 + $0x30] sm:$0xff] %v2430
        %2453 = vst [vmem:[%s207 + $0x38] sm:$0xff] %v2437
        %s2454 = sand.u32 %s99, 1
        %s2455 = scalar_lea.sflag [#allocation5], %s2454
        %s2456 = sand.u32 %s99, 1
        %s2457 = smul.addr %s2456, 64
        %s2458 = scalar_lea.vmem [#allocation8], %s2457
        // Predicated region
        $region41: #{tpu_custom_call.1} parent=31 // pred_check
          %p2459 = pneg %p109
        $region42: #{tpu_custom_call.1} parent=31 // pred_check_branch
          %2461 = sbr.rel (%p2459) target = $region44
        $region43: #{tpu_custom_call.1} parent=31 // pred_region
          %2463 = vsyncadd %s2455, 0
          %s2464 = smul.addr %s23, 32
          %s2465 = smul.addr %s2464, 2
          %s2466 = scalar_lea.hbm %s3, %s2465
          %s2468 = sshll.u32 %s2458, 4
          %s2469 = int_to_ptr.vmem [resolvable:$true] %s2468
          %s2470 = sshll.u32 %s2466, 4
          %s2471 = int_to_ptr.hbm [resolvable:$true] %s2470
          %2473 = dma.vmem_to_hbm [thread:$0]  %s2469, 1024, %s2471, %s2455
        $region44: #{tpu_custom_call.1} parent=31 // pred_fallthru
          _
      $region32: #{tpu_custom_call.1} parent=5 // pred_fallthru
        _
      %p2474 = scmp.le.s32.totalorder 2, %s18
      // Predicated region
      $region45: #{tpu_custom_call.1} parent=5 // pred_check
        %p2475 = pneg %p2474
      $region46: #{tpu_custom_call.1} parent=5 // pred_check_branch
        %2477 = sbr.rel (%p2475) target = $region48
      $region47: #{tpu_custom_call.1} parent=5 // pred_region
        %s2478 = ssub.s32 %s18, 2
        // Predicated region
        $region49: #{tpu_custom_call.1} parent=47 // pred_check
          %p2479 = pneg %p115
        $region50: #{tpu_custom_call.1} parent=47 // pred_check_branch
          %2481 = sbr.rel (%p2479) target = $region52
        $region51: #{tpu_custom_call.1} parent=47 // pred_region
          %s2482 = sand.u32 %s100, 1
          %s2483 = scalar_lea.sflag [#allocation5], %s2482
          %s2484 = sand.u32 %s100, 1
          %s2485 = smul.addr %s2484, 64
          %s2486 = scalar_lea.vmem [#allocation8], %s2485
          %2488 = dma.done %s2483, 1024
        $region52: #{tpu_custom_call.1} parent=47 // pred_fallthru
          _
      $region48: #{tpu_custom_call.1} parent=5 // pred_fallthru
        _
    $region6: #{tpu_custom_call.1} parent=1 // loop_footer
      %s22 = sadd.s32 1, %s18
    $region7: #{tpu_custom_call.1} parent=1 // loop_footer_branch
      %17 = sbr.rel target = $region3
    $region8: #{tpu_custom_call.1} parent=1 // loop_exit
      _
    %2489 = vsyncpa [#allocation4], 1
    %s2490 = scalar_lea.sflag [#allocation4], 1
    %2491 = vsyncpa %s2490, 1
    %2492 = vsyncpa [#allocation7], 1
    %2493 = vsyncpa [#allocation5], 1
    %s2494 = scalar_lea.sflag [#allocation5], 1
    %2495 = vsyncpa %s2494, 1

</llo_original>
